<compile_context>
chip_gen: v6e
topology: v6e:2x2x1
jax: 0.10.0
libtpu: 0.0.40
codegen_flags: <defaults>
</compile_context>

<pallas_src>
import functools

import jax
import jax.numpy as jnp
import numpy as np
from jax.experimental import pallas as pl
from jax.experimental.pallas import tpu as pltpu

_LANE = 128


def _round_up(x, m):
    return (x + m - 1) // m * m


def _layernorm(x, g, b, eps=1e-5):
    mu = jnp.mean(x, axis=-1, keepdims=True)
    var = jnp.mean((x - mu) ** 2, axis=-1, keepdims=True)
    return (x - mu) * jax.lax.rsqrt(var + eps) * g + b


# ----------------------------- kernels --------------------------------------


def transformer_block_kernel(
    x_ref,
    ln1g_ref, ln1b_ref,
    wqkv_ref, bqkv_ref,
    wp_ref, bp_ref,
    ln2g_ref, ln2b_ref,
    w1_ref, b1_ref,
    w2_ref, b2_ref,
    o_ref,
    *, num_heads,
):
    x = x_ref[0]                                   # (T, E) f32
    T, E = x.shape
    H = num_heads
    hs = E // H

    # ---- attention branch ----
    xn = _layernorm(x, ln1g_ref[...], ln1b_ref[...])

    # Fused QKV: one lane-dense (T,E)x(E,3E) MXU matmul (bf16 in, f32 acc).
    # E**-0.5 scale is already folded into the Q section of wqkv / bqkv.
    qkv = jnp.dot(xn.astype(jnp.bfloat16), wqkv_ref[...],
                  preferred_element_type=jnp.float32) + bqkv_ref[...]

    row = jax.lax.broadcasted_iota(jnp.int32, (T, T), 0)
    col = jax.lax.broadcasted_iota(jnp.int32, (T, T), 1)
    causal = col <= row                            # True where allowed (tril)

    # Accumulate each head directly through its slice of the output projection
    # (no concatenate / cross-lane shuffles):
    #   att = sum_h softmax(q_h k_h^T) v_h @ Wp[h*hs:(h+1)*hs, :]
    acc = jnp.zeros((T, E), jnp.float32)
    for h in range(H):                             # static, small unrolled loop
        q = qkv[:, h * hs:(h + 1) * hs]
        k = qkv[:, E + h * hs:E + (h + 1) * hs]
        v = qkv[:, 2 * E + h * hs:2 * E + (h + 1) * hs]
        s = jax.lax.dot_general(
            q.astype(jnp.bfloat16), k.astype(jnp.bfloat16),
            (((1,), (1,)), ((), ())), preferred_element_type=jnp.float32)
        s = jnp.where(causal, s, -jnp.inf)
        # manual softmax: max-subtract, EUP reciprocal for the denominator
        m = jnp.max(s, axis=-1, keepdims=True)
        e = jnp.exp(s - m)
        p = e * pl.reciprocal(jnp.sum(e, axis=-1, keepdims=True), approx=True)
        # dropout: identity (eval mode)
        oh = jnp.dot(p.astype(jnp.bfloat16), v.astype(jnp.bfloat16),
                     preferred_element_type=jnp.float32)          # (T, hs)
        acc = acc + jnp.dot(oh.astype(jnp.bfloat16),
                            wp_ref[h * hs:(h + 1) * hs, :],
                            preferred_element_type=jnp.float32)   # (T, E)

    x = x + acc + bp_ref[...]                      # residual 1 (+ proj bias)

    # ---- MLP branch ----
    xn2 = _layernorm(x, ln2g_ref[...], ln2b_ref[...])
    h1 = jnp.dot(xn2.astype(jnp.bfloat16), w1_ref[...],
                 preferred_element_type=jnp.float32) + b1_ref[...]
    h1 = jnp.maximum(h1, 0.0)                      # ReLU
    mlp = jnp.dot(h1.astype(jnp.bfloat16), w2_ref[...],
                  preferred_element_type=jnp.float32) + b2_ref[...]
    o_ref[0] = x + mlp                             # residual 2


def final_head_kernel(x_ref, lng_ref, lnb_ref, wh_ref, bh_ref, o_ref):
    xn = _layernorm(x_ref[0], lng_ref[...], lnb_ref[...])
    o_ref[0] = jnp.dot(xn.astype(jnp.bfloat16), wh_ref[...],
                       preferred_element_type=jnp.float32) + bh_ref[...]


# ----------------------------- wrappers -------------------------------------


def run_block(x, layer, num_heads, vmem_limit):
    B, T, E = x.shape
    kern = functools.partial(transformer_block_kernel, num_heads=num_heads)
    # All weights are 2-D and grid-invariant: full-resident, constant index_map
    # (same block index every grid step -> no re-DMA across the batch axis).
    w_specs = [pl.BlockSpec(p.shape, lambda b: (0, 0)) for p in layer]
    return pl.pallas_call(
        kern,
        out_shape=jax.ShapeDtypeStruct((B, T, E), jnp.float32),
        grid_spec=pltpu.PrefetchScalarGridSpec(
            num_scalar_prefetch=0,
            grid=(B,),
            in_specs=[pl.BlockSpec((1, T, E), lambda b: (b, 0, 0))] + w_specs,
            out_specs=pl.BlockSpec((1, T, E), lambda b: (b, 0, 0)),
        ),
        compiler_params=pltpu.CompilerParams(
            dimension_semantics=("parallel",),
            vmem_limit_bytes=vmem_limit),
    )(x, *layer)


def run_final(x, final_params, vocab_pad, tn, vmem_limit):
    B, T, E = x.shape
    lng, lnb, wh, bh = final_params
    n_vtiles = vocab_pad // tn
    return pl.pallas_call(
        final_head_kernel,
        out_shape=jax.ShapeDtypeStruct((B, T, vocab_pad), jnp.float32),
        grid_spec=pltpu.PrefetchScalarGridSpec(
            num_scalar_prefetch=0,
            grid=(B, n_vtiles),
            in_specs=[
                pl.BlockSpec((1, T, E), lambda b, j: (b, 0, 0)),
                pl.BlockSpec(lng.shape, lambda b, j: (0, 0)),
                pl.BlockSpec(lnb.shape, lambda b, j: (0, 0)),
                pl.BlockSpec((E, tn), lambda b, j: (0, j)),   # stream lm_head weight
                pl.BlockSpec((1, tn), lambda b, j: (0, j)),
            ],
            out_specs=pl.BlockSpec((1, T, tn), lambda b, j: (b, 0, j)),
        ),
        compiler_params=pltpu.CompilerParams(
            dimension_semantics=("parallel", "parallel"),
            vmem_limit_bytes=vmem_limit),
    )(x, lng, lnb, wh, bh)


# ----------------------------- params ---------------------------------------


def init_params(key, *, vocab_size, context_size, embedding_dim, num_layers, num_heads):
    """Canonical (PyTorch-layout) f32 parameters."""
    E = embedding_dim
    keys = iter(jax.random.split(key, 16 * num_layers + 8))

    def w(shape, s=0.02):
        return jax.random.normal(next(keys), shape, dtype=jnp.float32) * s

    layers = []
    for _ in range(num_layers):
        layers.append(dict(
            ln1_g=jnp.ones((E,), jnp.float32), ln1_b=jnp.zeros((E,), jnp.float32),
            wq=w((E, E)), bq=w((E,)),          # heads concatenated along output dim
            wk=w((E, E)), bk=w((E,)),
            wv=w((E, E)), bv=w((E,)),
            wp=w((E, E)), bp=w((E,)),
            ln2_g=jnp.ones((E,), jnp.float32), ln2_b=jnp.zeros((E,), jnp.float32),
            w1=w((E, 4 * E)), b1=w((4 * E,)),
            w2=w((4 * E, E)), b2=w((E,)),
        ))
    final = dict(
        lnf_g=jnp.ones((E,), jnp.float32), lnf_b=jnp.zeros((E,), jnp.float32),
        wh=w((E, vocab_size)), bh=w((vocab_size,)),
    )
    return dict(
        tok_table=w((vocab_size, E), 1.0),
        pos_table=w((context_size, E), 1.0),
        layers=layers, final=final,
        num_heads=num_heads, vocab_size=vocab_size, embedding_dim=E,
    )


def prepare_kernel_params(params):
    """Build kernel-ready weights: fused QKV (scale folded in), bf16 MXU inputs,
    lane-padded lm_head."""
    E = params["embedding_dim"]
    scale = float(E) ** -0.5   # reference quirk: C ** (-0.5), C = embedding_dim
    layers_k = []
    for L in params["layers"]:
        wqkv = jnp.concatenate([L["wq"] * scale, L["wk"], L["wv"]], axis=1)  # (E, 3E)
        bqkv = jnp.concatenate([L["bq"] * scale, L["bk"], L["bv"]], axis=0)  # (3E,)
        layers_k.append((
            L["ln1_g"][None, :], L["ln1_b"][None, :],
            wqkv.astype(jnp.bfloat16), bqkv[None, :],
            L["wp"].astype(jnp.bfloat16), L["bp"][None, :],
            L["ln2_g"][None, :], L["ln2_b"][None, :],
            L["w1"].astype(jnp.bfloat16), L["b1"][None, :],
            L["w2"].astype(jnp.bfloat16), L["b2"][None, :],
        ))
    V = params["vocab_size"]
    Vp = _round_up(V, _LANE)
    F = params["final"]
    wh = jnp.pad(F["wh"], ((0, 0), (0, Vp - V)))
    bh = jnp.pad(F["bh"], (0, Vp - V))
    final_k = (F["lnf_g"][None, :], F["lnf_b"][None, :],
               wh.astype(jnp.bfloat16), bh[None, :])
    return layers_k, final_k, Vp


def _vmem_limit_bytes(layers_k, final_k, T, E, tn):
    def nb(a):
        return int(np.prod(a.shape)) * a.dtype.itemsize
    wl = max((sum(nb(p) for p in layer) for layer in layers_k), default=0)
    wf = sum(nb(p) for p in final_k)
    act = T * E * 4
    out_f = T * tn * 4
    # weights (default double-buffered) + double-buffered in/out activation tiles + slack
    need = 2 * max(wl, wf) + 4 * (act + out_f) + (1 << 20)
    return int(min(48 << 20, max(16 << 20, 2 * need)))


# ----------------------------- forward ---------------------------------------


def transformer_forward(params, inputs, targets=None):
    """inputs: (B, T) int32 token ids."""
    B, T = inputs.shape
    E = params["embedding_dim"]
    V = params["vocab_size"]
    layers_k, final_k, Vp = prepare_kernel_params(params)
    tn = min(Vp, _LANE * 2) if Vp % (_LANE * 2) == 0 else _LANE
    vmem_limit = _vmem_limit_bytes(layers_k, final_k, T, E, tn)

    # Embedding gathers (irregular gather kept in plain JAX glue).
    tok_emb = params["tok_table"][inputs]                  # (B, T, E)
    pos_emb = params["pos_table"][:T]                      # (T, E)
    x = (tok_emb + pos_emb[None, :, :]).astype(jnp.float32)

    for layer in layers_k:
        x = run_block(x, layer, params["num_heads"], vmem_limit)

    logits = run_final(x, final_k, Vp, tn, vmem_limit)[..., :V]

    if targets is None:
        return logits, None

    # cross-entropy (glue)
    lf = logits.reshape(B * T, V)
    tf = targets.reshape(B * T)
    logz = jax.nn.logsumexp(lf, axis=-1)
    ll = jnp.take_along_axis(lf, tf[:, None], axis=1)[:, 0]
    loss = jnp.mean(logz - ll)
    return logits, loss


# ----------------------------- reference (pure JAX f32, for verification) ----


def reference_forward(params, inputs):
    B, T = inputs.shape
    E = params["embedding_dim"]
    H = params["num_heads"]
    hs = E // H
    x = params["tok_table"][inputs] + params["pos_table"][:T][None]
    causal = np.tril(np.ones((T, T), dtype=bool))
    for L in params["layers"]:
        xn = _layernorm(x, L["ln1_g"], L["ln1_b"])
        outs = []
        for h in range(H):
            sl = slice(h * hs, (h + 1) * hs)
            q = xn @ L["wq"][:, sl] + L["bq"][sl]
            k = xn @ L["wk"][:, sl] + L["bk"][sl]
            v = xn @ L["wv"][:, sl] + L["bv"][sl]
            wei = jnp.einsum("btd,bsd->bts", q, k) * (E ** -0.5)
            wei = jnp.where(causal[None], wei, -jnp.inf)
            wei = jax.nn.softmax(wei, axis=-1)
            outs.append(wei @ v)
        att = jnp.concatenate(outs, axis=-1) @ L["wp"] + L["bp"]
        x = x + att
        xn2 = _layernorm(x, L["ln2_g"], L["ln2_b"])
        x = x + (jnp.maximum(xn2 @ L["w1"] + L["b1"], 0.0) @ L["w2"] + L["b2"])
    F = params["final"]
    return _layernorm(x, F["lnf_g"], F["lnf_b"]) @ F["wh"] + F["bh"]


# ----------------------------- main ------------------------------------------


if __name__ == "__main__":
    cfg = dict(
        vocab_size=64,
        context_size=8,
        embedding_dim=32,
        num_layers=2,
        num_heads=4,
    )
    B, T = 2, 8

    key = jax.random.PRNGKey(0)
    pkey, ikey, tkey = jax.random.split(key, 3)
    params = init_params(pkey, **cfg)

    inputs = jax.random.randint(ikey, (B, T), 0, cfg["vocab_size"], dtype=jnp.int32)
    targets = jax.random.randint(tkey, (B, T), 0, cfg["vocab_size"], dtype=jnp.int32)

    logits, loss = transformer_forward(params, inputs, targets)
    logits = jax.block_until_ready(logits)
    loss = jax.block_until_ready(loss)

    # Sanity check against the pure-f32 JAX reference of the same math.
    # Tolerances widened because the kernel uses bf16 MXU inputs + approx reciprocal.
    ref = jax.block_until_ready(reference_forward(params, inputs))
    np.testing.assert_allclose(np.asarray(logits), np.asarray(ref), rtol=5e-2, atol=1e-2)
    assert logits.shape == (B, T, cfg["vocab_size"])
    assert np.isfinite(float(loss))

    print("KERNEL_OK")
</pallas_src>

<mosaic_0001>
module attributes {stable_mosaic.version = 11 : i64} {
  func.func @transformer_block_kernel(%arg0: i32, %arg1: memref<1x8x32xf32, #tpu.memory_space<vmem>>, %arg2: memref<1x32xf32, #tpu.memory_space<vmem>>, %arg3: memref<1x32xf32, #tpu.memory_space<vmem>>, %arg4: memref<32x96xbf16, #tpu.memory_space<vmem>>, %arg5: memref<1x96xf32, #tpu.memory_space<vmem>>, %arg6: memref<32x32xbf16, #tpu.memory_space<vmem>>, %arg7: memref<1x32xf32, #tpu.memory_space<vmem>>, %arg8: memref<1x32xf32, #tpu.memory_space<vmem>>, %arg9: memref<1x32xf32, #tpu.memory_space<vmem>>, %arg10: memref<32x128xbf16, #tpu.memory_space<vmem>>, %arg11: memref<1x128xf32, #tpu.memory_space<vmem>>, %arg12: memref<128x32xbf16, #tpu.memory_space<vmem>>, %arg13: memref<1x32xf32, #tpu.memory_space<vmem>>, %arg14: memref<1x8x32xf32, #tpu.memory_space<vmem>>) attributes {dimension_semantics = [#tpu.dimension_semantics<parallel>], iteration_bounds = array<i64: 2>, scalar_prefetch = 0 : i64, scratch_operands = 0 : i64, tpu.core_type = #tpu.core_type<tc>, window_params = [{transform_indices = @transform_0, window_bounds = array<i64: 1, 8, 32>}, {pipeline_mode = #tpu.pipeline_mode<synchronous>, transform_indices = @transform_1, window_bounds = array<i64: 1, 32>}, {pipeline_mode = #tpu.pipeline_mode<synchronous>, transform_indices = @transform_2, window_bounds = array<i64: 1, 32>}, {pipeline_mode = #tpu.pipeline_mode<synchronous>, transform_indices = @transform_3, window_bounds = array<i64: 32, 96>}, {pipeline_mode = #tpu.pipeline_mode<synchronous>, transform_indices = @transform_4, window_bounds = array<i64: 1, 96>}, {pipeline_mode = #tpu.pipeline_mode<synchronous>, transform_indices = @transform_5, window_bounds = array<i64: 32, 32>}, {pipeline_mode = #tpu.pipeline_mode<synchronous>, transform_indices = @transform_6, window_bounds = array<i64: 1, 32>}, {pipeline_mode = #tpu.pipeline_mode<synchronous>, transform_indices = @transform_7, window_bounds = array<i64: 1, 32>}, {pipeline_mode = #tpu.pipeline_mode<synchronous>, transform_indices = @transform_8, window_bounds = array<i64: 1, 32>}, {pipeline_mode = #tpu.pipeline_mode<synchronous>, transform_indices = @transform_9, window_bounds = array<i64: 32, 128>}, {pipeline_mode = #tpu.pipeline_mode<synchronous>, transform_indices = @transform_10, window_bounds = array<i64: 1, 128>}, {pipeline_mode = #tpu.pipeline_mode<synchronous>, transform_indices = @transform_11, window_bounds = array<i64: 128, 32>}, {pipeline_mode = #tpu.pipeline_mode<synchronous>, transform_indices = @transform_12, window_bounds = array<i64: 1, 32>}, {transform_indices = @transform_13, window_bounds = array<i64: 1, 8, 32>}]} {
    %c0 = arith.constant 0 : index
    %c0_0 = arith.constant 0 : index
    %c0_1 = arith.constant 0 : index
    %0 = vector.load %arg1[%c0, %c0_0, %c0_1] : memref<1x8x32xf32, #tpu.memory_space<vmem>>, vector<1x8x32xf32>
    %1 = vector.shape_cast %0 : vector<1x8x32xf32> to vector<8x32xf32>
    %c0_2 = arith.constant 0 : index
    %c0_3 = arith.constant 0 : index
    %2 = vector.load %arg2[%c0_2, %c0_3] : memref<1x32xf32, #tpu.memory_space<vmem>>, vector<1x32xf32>
    %c0_4 = arith.constant 0 : index
    %c0_5 = arith.constant 0 : index
    %3 = vector.load %arg3[%c0_4, %c0_5] : memref<1x32xf32, #tpu.memory_space<vmem>>, vector<1x32xf32>
    %cst = arith.constant dense<0.000000e+00> : vector<8xf32>
    %4 = vector.multi_reduction <add>, %1, %cst [1] : vector<8x32xf32> to vector<8xf32>
    %5 = vector.shape_cast %4 : vector<8xf32> to vector<8x1xf32>
    %cst_6 = arith.constant 3.200000e+01 : f32
    %6 = vector.broadcast %cst_6 : f32 to vector<8x1xf32>
    %7 = arith.divf %5, %6 : vector<8x1xf32>
    %8 = vector.broadcast %7 : vector<8x1xf32> to vector<8x32xf32>
    %9 = arith.subf %1, %8 : vector<8x32xf32>
    %10 = arith.mulf %9, %9 : vector<8x32xf32>
    %cst_7 = arith.constant dense<0.000000e+00> : vector<8xf32>
    %11 = vector.multi_reduction <add>, %10, %cst_7 [1] : vector<8x32xf32> to vector<8xf32>
    %12 = vector.shape_cast %11 : vector<8xf32> to vector<8x1xf32>
    %cst_8 = arith.constant 3.200000e+01 : f32
    %13 = vector.broadcast %cst_8 : f32 to vector<8x1xf32>
    %14 = arith.divf %12, %13 : vector<8x1xf32>
    %15 = vector.broadcast %7 : vector<8x1xf32> to vector<8x32xf32>
    %16 = arith.subf %1, %15 : vector<8x32xf32>
    %cst_9 = arith.constant 9.99999974E-6 : f32
    %17 = vector.broadcast %cst_9 : f32 to vector<8x1xf32>
    %18 = arith.addf %14, %17 : vector<8x1xf32>
    %19 = math.rsqrt %18 : vector<8x1xf32>
    %20 = vector.broadcast %19 : vector<8x1xf32> to vector<8x32xf32>
    %21 = arith.mulf %16, %20 : vector<8x32xf32>
    %22 = vector.broadcast %2 : vector<1x32xf32> to vector<8x32xf32>
    %23 = arith.mulf %21, %22 : vector<8x32xf32>
    %24 = vector.broadcast %3 : vector<1x32xf32> to vector<8x32xf32>
    %25 = arith.addf %23, %24 : vector<8x32xf32>
    %26 = arith.truncf %25 : vector<8x32xf32> to vector<8x32xbf16>
    %c0_10 = arith.constant 0 : index
    %c0_11 = arith.constant 0 : index
    %27 = vector.load %arg4[%c0_10, %c0_11] : memref<32x96xbf16, #tpu.memory_space<vmem>>, vector<32x96xbf16>
    %cst_12 = arith.constant dense<0.000000e+00> : vector<8x96xf32>
    %28 = tpu.matmul %26, %27, %cst_12 {dimension_numbers = #tpu.dot_dimension_numbers<[1], [0], [0], [1], [0, 0, 1, 1], [], []>} : vector<8x32xbf16>, vector<32x96xbf16>, vector<8x96xf32> -> vector<8x96xf32>
    %c0_13 = arith.constant 0 : index
    %c0_14 = arith.constant 0 : index
    %29 = vector.load %arg5[%c0_13, %c0_14] : memref<1x96xf32, #tpu.memory_space<vmem>>, vector<1x96xf32>
    %30 = vector.broadcast %29 : vector<1x96xf32> to vector<8x96xf32>
    %31 = arith.addf %28, %30 : vector<8x96xf32>
    %32 = tpu.iota {dimensions = array<i32: 0>} : vector<8x8xi32>
    %33 = tpu.iota {dimensions = array<i32: 1>} : vector<8x8xi32>
    %34 = arith.cmpi sle, %33, %32 : vector<8x8xi32>
    %cst_15 = arith.constant 0.000000e+00 : f32
    %35 = vector.broadcast %cst_15 : f32 to vector<8x32xf32>
    %36 = vector.extract_strided_slice %31 {offsets = [0, 0], sizes = [8, 8], strides = [1, 1]} : vector<8x96xf32> to vector<8x8xf32>
    %37 = vector.extract_strided_slice %31 {offsets = [0, 32], sizes = [8, 8], strides = [1, 1]} : vector<8x96xf32> to vector<8x8xf32>
    %38 = vector.extract_strided_slice %31 {offsets = [0, 64], sizes = [8, 8], strides = [1, 1]} : vector<8x96xf32> to vector<8x8xf32>
    %39 = arith.truncf %36 : vector<8x8xf32> to vector<8x8xbf16>
    %40 = arith.truncf %37 : vector<8x8xf32> to vector<8x8xbf16>
    %cst_16 = arith.constant dense<0.000000e+00> : vector<8x8xf32>
    %41 = tpu.matmul %39, %40, %cst_16 {dimension_numbers = #tpu.dot_dimension_numbers<[1], [1], [0], [0], [0, 0, 1, 0], [], []>} : vector<8x8xbf16>, vector<8x8xbf16>, vector<8x8xf32> -> vector<8x8xf32>
    %cst_17 = arith.constant 0xFF800000 : f32
    %42 = vector.broadcast %cst_17 : f32 to vector<8x8xf32>
    %43 = arith.select %34, %41, %42 : vector<8x8xi1>, vector<8x8xf32>
    %cst_18 = arith.constant dense<0xFF800000> : vector<8xf32>
    %44 = vector.multi_reduction <maximumf>, %43, %cst_18 [1] : vector<8x8xf32> to vector<8xf32>
    %45 = vector.shape_cast %44 : vector<8xf32> to vector<8x1xf32>
    %46 = vector.broadcast %45 : vector<8x1xf32> to vector<8x8xf32>
    %47 = arith.subf %43, %46 : vector<8x8xf32>
    %48 = math.exp %47 : vector<8x8xf32>
    %cst_19 = arith.constant dense<0.000000e+00> : vector<8xf32>
    %49 = vector.multi_reduction <add>, %48, %cst_19 [1] : vector<8x8xf32> to vector<8xf32>
    %50 = vector.shape_cast %49 : vector<8xf32> to vector<8x1xf32>
    %51 = tpu.reciprocal %50 {approx = true} : vector<8x1xf32> -> vector<8x1xf32>
    %52 = vector.broadcast %51 : vector<8x1xf32> to vector<8x8xf32>
    %53 = arith.mulf %48, %52 : vector<8x8xf32>
    %54 = arith.truncf %53 : vector<8x8xf32> to vector<8x8xbf16>
    %55 = arith.truncf %38 : vector<8x8xf32> to vector<8x8xbf16>
    %cst_20 = arith.constant dense<0.000000e+00> : vector<8x8xf32>
    %56 = tpu.matmul %54, %55, %cst_20 {dimension_numbers = #tpu.dot_dimension_numbers<[1], [0], [0], [1], [0, 0, 1, 1], [], []>} : vector<8x8xbf16>, vector<8x8xbf16>, vector<8x8xf32> -> vector<8x8xf32>
    %57 = arith.truncf %56 : vector<8x8xf32> to vector<8x8xbf16>
    %c0_21 = arith.constant 0 : index
    %c0_22 = arith.constant 0 : index
    %58 = vector.load %arg6[%c0_21, %c0_22] : memref<32x32xbf16, #tpu.memory_space<vmem>>, vector<8x32xbf16>
    %cst_23 = arith.constant dense<0.000000e+00> : vector<8x32xf32>
    %59 = tpu.matmul %57, %58, %cst_23 {dimension_numbers = #tpu.dot_dimension_numbers<[1], [0], [0], [1], [0, 0, 1, 1], [], []>} : vector<8x8xbf16>, vector<8x32xbf16>, vector<8x32xf32> -> vector<8x32xf32>
    %60 = arith.addf %35, %59 : vector<8x32xf32>
    %61 = vector.extract_strided_slice %31 {offsets = [0, 8], sizes = [8, 8], strides = [1, 1]} : vector<8x96xf32> to vector<8x8xf32>
    %62 = vector.extract_strided_slice %31 {offsets = [0, 40], sizes = [8, 8], strides = [1, 1]} : vector<8x96xf32> to vector<8x8xf32>
    %63 = vector.extract_strided_slice %31 {offsets = [0, 72], sizes = [8, 8], strides = [1, 1]} : vector<8x96xf32> to vector<8x8xf32>
    %64 = arith.truncf %61 : vector<8x8xf32> to vector<8x8xbf16>
    %65 = arith.truncf %62 : vector<8x8xf32> to vector<8x8xbf16>
    %cst_24 = arith.constant dense<0.000000e+00> : vector<8x8xf32>
    %66 = tpu.matmul %64, %65, %cst_24 {dimension_numbers = #tpu.dot_dimension_numbers<[1], [1], [0], [0], [0, 0, 1, 0], [], []>} : vector<8x8xbf16>, vector<8x8xbf16>, vector<8x8xf32> -> vector<8x8xf32>
    %cst_25 = arith.constant 0xFF800000 : f32
    %67 = vector.broadcast %cst_25 : f32 to vector<8x8xf32>
    %68 = arith.select %34, %66, %67 : vector<8x8xi1>, vector<8x8xf32>
    %cst_26 = arith.constant dense<0xFF800000> : vector<8xf32>
    %69 = vector.multi_reduction <maximumf>, %68, %cst_26 [1] : vector<8x8xf32> to vector<8xf32>
    %70 = vector.shape_cast %69 : vector<8xf32> to vector<8x1xf32>
    %71 = vector.broadcast %70 : vector<8x1xf32> to vector<8x8xf32>
    %72 = arith.subf %68, %71 : vector<8x8xf32>
    %73 = math.exp %72 : vector<8x8xf32>
    %cst_27 = arith.constant dense<0.000000e+00> : vector<8xf32>
    %74 = vector.multi_reduction <add>, %73, %cst_27 [1] : vector<8x8xf32> to vector<8xf32>
    %75 = vector.shape_cast %74 : vector<8xf32> to vector<8x1xf32>
    %76 = tpu.reciprocal %75 {approx = true} : vector<8x1xf32> -> vector<8x1xf32>
    %77 = vector.broadcast %76 : vector<8x1xf32> to vector<8x8xf32>
    %78 = arith.mulf %73, %77 : vector<8x8xf32>
    %79 = arith.truncf %78 : vector<8x8xf32> to vector<8x8xbf16>
    %80 = arith.truncf %63 : vector<8x8xf32> to vector<8x8xbf16>
    %cst_28 = arith.constant dense<0.000000e+00> : vector<8x8xf32>
    %81 = tpu.matmul %79, %80, %cst_28 {dimension_numbers = #tpu.dot_dimension_numbers<[1], [0], [0], [1], [0, 0, 1, 1], [], []>} : vector<8x8xbf16>, vector<8x8xbf16>, vector<8x8xf32> -> vector<8x8xf32>
    %82 = arith.truncf %81 : vector<8x8xf32> to vector<8x8xbf16>
    %c8 = arith.constant 8 : index
    %c0_29 = arith.constant 0 : index
    %83 = vector.load %arg6[%c8, %c0_29] : memref<32x32xbf16, #tpu.memory_space<vmem>>, vector<8x32xbf16>
    %cst_30 = arith.constant dense<0.000000e+00> : vector<8x32xf32>
    %84 = tpu.matmul %82, %83, %cst_30 {dimension_numbers = #tpu.dot_dimension_numbers<[1], [0], [0], [1], [0, 0, 1, 1], [], []>} : vector<8x8xbf16>, vector<8x32xbf16>, vector<8x32xf32> -> vector<8x32xf32>
    %85 = arith.addf %60, %84 : vector<8x32xf32>
    %86 = vector.extract_strided_slice %31 {offsets = [0, 16], sizes = [8, 8], strides = [1, 1]} : vector<8x96xf32> to vector<8x8xf32>
    %87 = vector.extract_strided_slice %31 {offsets = [0, 48], sizes = [8, 8], strides = [1, 1]} : vector<8x96xf32> to vector<8x8xf32>
    %88 = vector.extract_strided_slice %31 {offsets = [0, 80], sizes = [8, 8], strides = [1, 1]} : vector<8x96xf32> to vector<8x8xf32>
    %89 = arith.truncf %86 : vector<8x8xf32> to vector<8x8xbf16>
    %90 = arith.truncf %87 : vector<8x8xf32> to vector<8x8xbf16>
    %cst_31 = arith.constant dense<0.000000e+00> : vector<8x8xf32>
    %91 = tpu.matmul %89, %90, %cst_31 {dimension_numbers = #tpu.dot_dimension_numbers<[1], [1], [0], [0], [0, 0, 1, 0], [], []>} : vector<8x8xbf16>, vector<8x8xbf16>, vector<8x8xf32> -> vector<8x8xf32>
    %cst_32 = arith.constant 0xFF800000 : f32
    %92 = vector.broadcast %cst_32 : f32 to vector<8x8xf32>
    %93 = arith.select %34, %91, %92 : vector<8x8xi1>, vector<8x8xf32>
    %cst_33 = arith.constant dense<0xFF800000> : vector<8xf32>
    %94 = vector.multi_reduction <maximumf>, %93, %cst_33 [1] : vector<8x8xf32> to vector<8xf32>
    %95 = vector.shape_cast %94 : vector<8xf32> to vector<8x1xf32>
    %96 = vector.broadcast %95 : vector<8x1xf32> to vector<8x8xf32>
    %97 = arith.subf %93, %96 : vector<8x8xf32>
    %98 = math.exp %97 : vector<8x8xf32>
    %cst_34 = arith.constant dense<0.000000e+00> : vector<8xf32>
    %99 = vector.multi_reduction <add>, %98, %cst_34 [1] : vector<8x8xf32> to vector<8xf32>
    %100 = vector.shape_cast %99 : vector<8xf32> to vector<8x1xf32>
    %101 = tpu.reciprocal %100 {approx = true} : vector<8x1xf32> -> vector<8x1xf32>
    %102 = vector.broadcast %101 : vector<8x1xf32> to vector<8x8xf32>
    %103 = arith.mulf %98, %102 : vector<8x8xf32>
    %104 = arith.truncf %103 : vector<8x8xf32> to vector<8x8xbf16>
    %105 = arith.truncf %88 : vector<8x8xf32> to vector<8x8xbf16>
    %cst_35 = arith.constant dense<0.000000e+00> : vector<8x8xf32>
    %106 = tpu.matmul %104, %105, %cst_35 {dimension_numbers = #tpu.dot_dimension_numbers<[1], [0], [0], [1], [0, 0, 1, 1], [], []>} : vector<8x8xbf16>, vector<8x8xbf16>, vector<8x8xf32> -> vector<8x8xf32>
    %107 = arith.truncf %106 : vector<8x8xf32> to vector<8x8xbf16>
    %c16 = arith.constant 16 : index
    %c0_36 = arith.constant 0 : index
    %108 = vector.load %arg6[%c16, %c0_36] : memref<32x32xbf16, #tpu.memory_space<vmem>>, vector<8x32xbf16>
    %cst_37 = arith.constant dense<0.000000e+00> : vector<8x32xf32>
    %109 = tpu.matmul %107, %108, %cst_37 {dimension_numbers = #tpu.dot_dimension_numbers<[1], [0], [0], [1], [0, 0, 1, 1], [], []>} : vector<8x8xbf16>, vector<8x32xbf16>, vector<8x32xf32> -> vector<8x32xf32>
    %110 = arith.addf %85, %109 : vector<8x32xf32>
    %111 = vector.extract_strided_slice %31 {offsets = [0, 24], sizes = [8, 8], strides = [1, 1]} : vector<8x96xf32> to vector<8x8xf32>
    %112 = vector.extract_strided_slice %31 {offsets = [0, 56], sizes = [8, 8], strides = [1, 1]} : vector<8x96xf32> to vector<8x8xf32>
    %113 = vector.extract_strided_slice %31 {offsets = [0, 88], sizes = [8, 8], strides = [1, 1]} : vector<8x96xf32> to vector<8x8xf32>
    %114 = arith.truncf %111 : vector<8x8xf32> to vector<8x8xbf16>
    %115 = arith.truncf %112 : vector<8x8xf32> to vector<8x8xbf16>
    %cst_38 = arith.constant dense<0.000000e+00> : vector<8x8xf32>
    %116 = tpu.matmul %114, %115, %cst_38 {dimension_numbers = #tpu.dot_dimension_numbers<[1], [1], [0], [0], [0, 0, 1, 0], [], []>} : vector<8x8xbf16>, vector<8x8xbf16>, vector<8x8xf32> -> vector<8x8xf32>
    %cst_39 = arith.constant 0xFF800000 : f32
    %117 = vector.broadcast %cst_39 : f32 to vector<8x8xf32>
    %118 = arith.select %34, %116, %117 : vector<8x8xi1>, vector<8x8xf32>
    %cst_40 = arith.constant dense<0xFF800000> : vector<8xf32>
    %119 = vector.multi_reduction <maximumf>, %118, %cst_40 [1] : vector<8x8xf32> to vector<8xf32>
    %120 = vector.shape_cast %119 : vector<8xf32> to vector<8x1xf32>
    %121 = vector.broadcast %120 : vector<8x1xf32> to vector<8x8xf32>
    %122 = arith.subf %118, %121 : vector<8x8xf32>
    %123 = math.exp %122 : vector<8x8xf32>
    %cst_41 = arith.constant dense<0.000000e+00> : vector<8xf32>
    %124 = vector.multi_reduction <add>, %123, %cst_41 [1] : vector<8x8xf32> to vector<8xf32>
    %125 = vector.shape_cast %124 : vector<8xf32> to vector<8x1xf32>
    %126 = tpu.reciprocal %125 {approx = true} : vector<8x1xf32> -> vector<8x1xf32>
    %127 = vector.broadcast %126 : vector<8x1xf32> to vector<8x8xf32>
    %128 = arith.mulf %123, %127 : vector<8x8xf32>
    %129 = arith.truncf %128 : vector<8x8xf32> to vector<8x8xbf16>
    %130 = arith.truncf %113 : vector<8x8xf32> to vector<8x8xbf16>
    %cst_42 = arith.constant dense<0.000000e+00> : vector<8x8xf32>
    %131 = tpu.matmul %129, %130, %cst_42 {dimension_numbers = #tpu.dot_dimension_numbers<[1], [0], [0], [1], [0, 0, 1, 1], [], []>} : vector<8x8xbf16>, vector<8x8xbf16>, vector<8x8xf32> -> vector<8x8xf32>
    %132 = arith.truncf %131 : vector<8x8xf32> to vector<8x8xbf16>
    %c24 = arith.constant 24 : index
    %c0_43 = arith.constant 0 : index
    %133 = vector.load %arg6[%c24, %c0_43] : memref<32x32xbf16, #tpu.memory_space<vmem>>, vector<8x32xbf16>
    %cst_44 = arith.constant dense<0.000000e+00> : vector<8x32xf32>
    %134 = tpu.matmul %132, %133, %cst_44 {dimension_numbers = #tpu.dot_dimension_numbers<[1], [0], [0], [1], [0, 0, 1, 1], [], []>} : vector<8x8xbf16>, vector<8x32xbf16>, vector<8x32xf32> -> vector<8x32xf32>
    %135 = arith.addf %110, %134 : vector<8x32xf32>
    %136 = arith.addf %1, %135 : vector<8x32xf32>
    %c0_45 = arith.constant 0 : index
    %c0_46 = arith.constant 0 : index
    %137 = vector.load %arg7[%c0_45, %c0_46] : memref<1x32xf32, #tpu.memory_space<vmem>>, vector<1x32xf32>
    %138 = vector.broadcast %137 : vector<1x32xf32> to vector<8x32xf32>
    %139 = arith.addf %136, %138 : vector<8x32xf32>
    %c0_47 = arith.constant 0 : index
    %c0_48 = arith.constant 0 : index
    %140 = vector.load %arg8[%c0_47, %c0_48] : memref<1x32xf32, #tpu.memory_space<vmem>>, vector<1x32xf32>
    %c0_49 = arith.constant 0 : index
    %c0_50 = arith.constant 0 : index
    %141 = vector.load %arg9[%c0_49, %c0_50] : memref<1x32xf32, #tpu.memory_space<vmem>>, vector<1x32xf32>
    %cst_51 = arith.constant dense<0.000000e+00> : vector<8xf32>
    %142 = vector.multi_reduction <add>, %139, %cst_51 [1] : vector<8x32xf32> to vector<8xf32>
    %143 = vector.shape_cast %142 : vector<8xf32> to vector<8x1xf32>
    %cst_52 = arith.constant 3.200000e+01 : f32
    %144 = vector.broadcast %cst_52 : f32 to vector<8x1xf32>
    %145 = arith.divf %143, %144 : vector<8x1xf32>
    %146 = vector.broadcast %145 : vector<8x1xf32> to vector<8x32xf32>
    %147 = arith.subf %139, %146 : vector<8x32xf32>
    %148 = arith.mulf %147, %147 : vector<8x32xf32>
    %cst_53 = arith.constant dense<0.000000e+00> : vector<8xf32>
    %149 = vector.multi_reduction <add>, %148, %cst_53 [1] : vector<8x32xf32> to vector<8xf32>
    %150 = vector.shape_cast %149 : vector<8xf32> to vector<8x1xf32>
    %cst_54 = arith.constant 3.200000e+01 : f32
    %151 = vector.broadcast %cst_54 : f32 to vector<8x1xf32>
    %152 = arith.divf %150, %151 : vector<8x1xf32>
    %153 = vector.broadcast %145 : vector<8x1xf32> to vector<8x32xf32>
    %154 = arith.subf %139, %153 : vector<8x32xf32>
    %cst_55 = arith.constant 9.99999974E-6 : f32
    %155 = vector.broadcast %cst_55 : f32 to vector<8x1xf32>
    %156 = arith.addf %152, %155 : vector<8x1xf32>
    %157 = math.rsqrt %156 : vector<8x1xf32>
    %158 = vector.broadcast %157 : vector<8x1xf32> to vector<8x32xf32>
    %159 = arith.mulf %154, %158 : vector<8x32xf32>
    %160 = vector.broadcast %140 : vector<1x32xf32> to vector<8x32xf32>
    %161 = arith.mulf %159, %160 : vector<8x32xf32>
    %162 = vector.broadcast %141 : vector<1x32xf32> to vector<8x32xf32>
    %163 = arith.addf %161, %162 : vector<8x32xf32>
    %164 = arith.truncf %163 : vector<8x32xf32> to vector<8x32xbf16>
    %c0_56 = arith.constant 0 : index
    %c0_57 = arith.constant 0 : index
    %165 = vector.load %arg10[%c0_56, %c0_57] : memref<32x128xbf16, #tpu.memory_space<vmem>>, vector<32x128xbf16>
    %cst_58 = arith.constant dense<0.000000e+00> : vector<8x128xf32>
    %166 = tpu.matmul %164, %165, %cst_58 {dimension_numbers = #tpu.dot_dimension_numbers<[1], [0], [0], [1], [0, 0, 1, 1], [], []>} : vector<8x32xbf16>, vector<32x128xbf16>, vector<8x128xf32> -> vector<8x128xf32>
    %c0_59 = arith.constant 0 : index
    %c0_60 = arith.constant 0 : index
    %167 = vector.load %arg11[%c0_59, %c0_60] : memref<1x128xf32, #tpu.memory_space<vmem>>, vector<1x128xf32>
    %168 = vector.broadcast %167 : vector<1x128xf32> to vector<8x128xf32>
    %169 = arith.addf %166, %168 : vector<8x128xf32>
    %cst_61 = arith.constant 0.000000e+00 : f32
    %170 = vector.broadcast %cst_61 : f32 to vector<8x128xf32>
    %171 = arith.maximumf %169, %170 : vector<8x128xf32>
    %172 = arith.truncf %171 : vector<8x128xf32> to vector<8x128xbf16>
    %c0_62 = arith.constant 0 : index
    %c0_63 = arith.constant 0 : index
    %173 = vector.load %arg12[%c0_62, %c0_63] : memref<128x32xbf16, #tpu.memory_space<vmem>>, vector<128x32xbf16>
    %cst_64 = arith.constant dense<0.000000e+00> : vector<8x32xf32>
    %174 = tpu.matmul %172, %173, %cst_64 {dimension_numbers = #tpu.dot_dimension_numbers<[1], [0], [0], [1], [0, 0, 1, 1], [], []>} : vector<8x128xbf16>, vector<128x32xbf16>, vector<8x32xf32> -> vector<8x32xf32>
    %c0_65 = arith.constant 0 : index
    %c0_66 = arith.constant 0 : index
    %175 = vector.load %arg13[%c0_65, %c0_66] : memref<1x32xf32, #tpu.memory_space<vmem>>, vector<1x32xf32>
    %176 = vector.broadcast %175 : vector<1x32xf32> to vector<8x32xf32>
    %177 = arith.addf %174, %176 : vector<8x32xf32>
    %178 = arith.addf %139, %177 : vector<8x32xf32>
    %c0_67 = arith.constant 0 : index
    %c0_68 = arith.constant 0 : index
    %c0_69 = arith.constant 0 : index
    %179 = vector.load %arg14[%c0_67, %c0_68, %c0_69] : memref<1x8x32xf32, #tpu.memory_space<vmem>>, vector<1x8x32xf32>
    %180 = vector.shape_cast %179 : vector<1x8x32xf32> to vector<8x32xf32>
    %181 = vector.shape_cast %178 : vector<8x32xf32> to vector<1x8x32xf32>
    tpu.vector_store %arg14[%c0_67, %c0_68, %c0_69], %181 {strides = array<i32>} : memref<1x8x32xf32, #tpu.memory_space<vmem>>, vector<1x8x32xf32>,
    return
  }
  func.func @transform_0(%arg0: i32) -> (i32, i32, i32) {
    %c0_i32 = arith.constant 0 : i32
    %c0_i32_0 = arith.constant 0 : i32
    %c0_i32_1 = arith.constant 0 : i32
    return %arg0, %c0_i32, %c0_i32_0 : i32, i32, i32
  }
  func.func @transform_1(%arg0: i32) -> (i32, i32) {
    %c0_i32 = arith.constant 0 : i32
    %c0_i32_0 = arith.constant 0 : i32
    %c0_i32_1 = arith.constant 0 : i32
    return %c0_i32, %c0_i32_0 : i32, i32
  }
  func.func @transform_2(%arg0: i32) -> (i32, i32) {
    %c0_i32 = arith.constant 0 : i32
    %c0_i32_0 = arith.constant 0 : i32
    %c0_i32_1 = arith.constant 0 : i32
    return %c0_i32, %c0_i32_0 : i32, i32
  }
  func.func @transform_3(%arg0: i32) -> (i32, i32) {
    %c0_i32 = arith.constant 0 : i32
    %c0_i32_0 = arith.constant 0 : i32
    %c0_i32_1 = arith.constant 0 : i32
    return %c0_i32, %c0_i32_0 : i32, i32
  }
  func.func @transform_4(%arg0: i32) -> (i32, i32) {
    %c0_i32 = arith.constant 0 : i32
    %c0_i32_0 = arith.constant 0 : i32
    %c0_i32_1 = arith.constant 0 : i32
    return %c0_i32, %c0_i32_0 : i32, i32
  }
  func.func @transform_5(%arg0: i32) -> (i32, i32) {
    %c0_i32 = arith.constant 0 : i32
    %c0_i32_0 = arith.constant 0 : i32
    %c0_i32_1 = arith.constant 0 : i32
    return %c0_i32, %c0_i32_0 : i32, i32
  }
  func.func @transform_6(%arg0: i32) -> (i32, i32) {
    %c0_i32 = arith.constant 0 : i32
    %c0_i32_0 = arith.constant 0 : i32
    %c0_i32_1 = arith.constant 0 : i32
    return %c0_i32, %c0_i32_0 : i32, i32
  }
  func.func @transform_7(%arg0: i32) -> (i32, i32) {
    %c0_i32 = arith.constant 0 : i32
    %c0_i32_0 = arith.constant 0 : i32
    %c0_i32_1 = arith.constant 0 : i32
    return %c0_i32, %c0_i32_0 : i32, i32
  }
  func.func @transform_8(%arg0: i32) -> (i32, i32) {
    %c0_i32 = arith.constant 0 : i32
    %c0_i32_0 = arith.constant 0 : i32
    %c0_i32_1 = arith.constant 0 : i32
    return %c0_i32, %c0_i32_0 : i32, i32
  }
  func.func @transform_9(%arg0: i32) -> (i32, i32) {
    %c0_i32 = arith.constant 0 : i32
    %c0_i32_0 = arith.constant 0 : i32
    %c0_i32_1 = arith.constant 0 : i32
    return %c0_i32, %c0_i32_0 : i32, i32
  }
  func.func @transform_10(%arg0: i32) -> (i32, i32) {
    %c0_i32 = arith.constant 0 : i32
    %c0_i32_0 = arith.constant 0 : i32
    %c0_i32_1 = arith.constant 0 : i32
    return %c0_i32, %c0_i32_0 : i32, i32
  }
  func.func @transform_11(%arg0: i32) -> (i32, i32) {
    %c0_i32 = arith.constant 0 : i32
    %c0_i32_0 = arith.constant 0 : i32
    %c0_i32_1 = arith.constant 0 : i32
    return %c0_i32, %c0_i32_0 : i32, i32
  }
  func.func @transform_12(%arg0: i32) -> (i32, i32) {
    %c0_i32 = arith.constant 0 : i32
    %c0_i32_0 = arith.constant 0 : i32
    %c0_i32_1 = arith.constant 0 : i32
    return %c0_i32, %c0_i32_0 : i32, i32
  }
  func.func @transform_13(%arg0: i32) -> (i32, i32, i32) {
    %c0_i32 = arith.constant 0 : i32
    %c0_i32_0 = arith.constant 0 : i32
    %c0_i32_1 = arith.constant 0 : i32
    return %arg0, %c0_i32, %c0_i32_0 : i32, i32, i32
  }
}

</mosaic_0001>

<llo_original>
// kernel: tpu_custom_call.1
$region0: #{tpu_custom_call.1}
  #allocation0 [shape = 'u32[]', space=smem, size = 0x4, offset = 0x4, fixed_abs, tag = 'smem constant byte address 0x4 - core index']
  #allocation1 [shape = 'u32[144,128]{1,0:T(1,128)}', space=vmem, size = 0x12000, scoped, tag = 'internal scratch']
  %s0 = inlined_call_operand.vmem [shape: f32[2,8,32], index: 0, kind: input, shape index: {}]
  %s1 = inlined_call_operand.vmem [shape: f32[1,32], index: 1, kind: input, shape index: {}]
  %s2 = inlined_call_operand.vmem [shape: f32[1,32], index: 2, kind: input, shape index: {}]
  %s3 = inlined_call_operand.vmem [shape: bf16[32,96], index: 3, kind: input, shape index: {}]
  %s4 = inlined_call_operand.vmem [shape: f32[1,96], index: 4, kind: input, shape index: {}]
  %s5 = inlined_call_operand.vmem [shape: bf16[32,32], index: 5, kind: input, shape index: {}]
  %s6 = inlined_call_operand.vmem [shape: f32[1,32], index: 6, kind: input, shape index: {}]
  %s7 = inlined_call_operand.vmem [shape: f32[1,32], index: 7, kind: input, shape index: {}]
  %s8 = inlined_call_operand.vmem [shape: f32[1,32], index: 8, kind: input, shape index: {}]
  %s9 = inlined_call_operand.vmem [shape: bf16[32,128], index: 9, kind: input, shape index: {}]
  %s10 = inlined_call_operand.vmem [shape: f32[1,128], index: 10, kind: input, shape index: {}]
  %s11 = inlined_call_operand.vmem [shape: bf16[128,32], index: 11, kind: input, shape index: {}]
  %s12 = inlined_call_operand.vmem [shape: f32[1,32], index: 12, kind: input, shape index: {}]
  %s13 = inlined_call_operand.hbm [shape: f32[2,8,32], index: 13, kind: output, shape index: {}]
  %s14 = sld [smem:[#allocation0]]
  $region85: #{tpu_custom_call.1} parent=0
    _
  %s16 = ssub.s32 1, %s14
  %s17 = scalar_select 0, %s16, %s14
  $region1: #{tpu_custom_call.1} parent=0
    #allocation2 [shape = 'u8[8192]{0}', space=vmem, size = 0x2000, scoped, tag = 'output window, operand 0']
    #allocation3 [shape = 's32[2]{0}', space=sflag, size = 0x8, scoped, tag = 'scoped memory for tpu_custom_call.1']
    %18 = vsyncpa [#allocation3], 0
    %s19 = scalar_lea.sflag [#allocation3], 1
    %20 = vsyncpa %s19, 0
    loop: start=0, step=1, limit=4
    $region2: #{tpu_custom_call.1} parent=1 // loop_pre_header
      _
    $region3: #{tpu_custom_call.1} parent=1 // loop_header
      %s22 = sphi 0, %s26
      %p23 = scmp.ge.s32.totalorder %s22, 4
      %s32 = sphi 0, %s34
      %s35 = sphi 0, %s32
      %s36 = sphi 0, %s35
      %s52 = sphi 0, %s36
      %s56 = sphi 0, %s56
      %s58 = sphi 0, %s56
      %s59 = sphi 0, %s58
      %s73 = sphi 0, %s59
      %s77 = sphi 0, %s77
      %s79 = sphi 0, %s77
      %s80 = sphi 0, %s79
      %s94 = sphi 0, %s80
      %s98 = sphi 0, %s98
      %s100 = sphi 0, %s98
      %s101 = sphi 0, %s100
      %s115 = sphi 0, %s101
      %s119 = sphi 0, %s119
      %s121 = sphi 0, %s119
      %s122 = sphi 0, %s121
      %s136 = sphi 0, %s122
      %s140 = sphi 0, %s140
      %s142 = sphi 0, %s140
      %s143 = sphi 0, %s142
      %s157 = sphi 0, %s143
      %s161 = sphi 0, %s161
      %s163 = sphi 0, %s161
      %s164 = sphi 0, %s163
      %s178 = sphi 0, %s164
      %s182 = sphi 0, %s182
      %s184 = sphi 0, %s182
      %s185 = sphi 0, %s184
      %s199 = sphi 0, %s185
      %s203 = sphi 0, %s203
      %s205 = sphi 0, %s203
      %s206 = sphi 0, %s205
      %s220 = sphi 0, %s206
      %s224 = sphi 0, %s224
      %s226 = sphi 0, %s224
      %s227 = sphi 0, %s226
      %s241 = sphi 0, %s227
      %s245 = sphi 0, %s245
      %s247 = sphi 0, %s245
      %s248 = sphi 0, %s247
      %s262 = sphi 0, %s248
      %s266 = sphi 0, %s266
      %s268 = sphi 0, %s266
      %s269 = sphi 0, %s268
      %s283 = sphi 0, %s269
      %s287 = sphi 0, %s287
      %s289 = sphi 0, %s287
      %s290 = sphi 0, %s289
      %s304 = sphi 0, %s290
      %s310 = sphi 0, %s312
      %s313 = sphi 0, %s310
      %s314 = sphi 0, %s313
      %s330 = sphi 0, %s314
    $region4: #{tpu_custom_call.1} parent=1 // loop_header_branch
      %25 = sbr.rel (%p23) target = $region8
    $region5: #{tpu_custom_call.1} parent=1 // loop_body
      %s27 = ssub.s32 %s22, 1
      %s28 = ssub.s32 %s22, 2
      %s29 = sadd.s32 %s22, 1
      %s30 = ssub.s32 %s22, %s29
      %p31 = scmp.eq.s32.totalorder %s30, 0
      %s33 = sadd.s32 %s32, 1
      %s34 = scalar_select %p31, %s32, %s33
      %p37 = pneg %p31
      %p38 = scmp.eq.s32.totalorder %s22, 1
      %p39 = por %p37, %p38
      %p40 = scmp.ne.s32.totalorder %s32, %s35
      %p41 = scmp.eq.s32.totalorder %s22, 0
      %p42 = por %p40, %p41
      %p43 = scmp.ne.s32.totalorder %s32, %s35
      %p44 = scmp.eq.s32.totalorder %s27, 1
      %p45 = por %p43, %p44
      %p46 = scmp.ne.s32.totalorder %s35, %s36
      %p47 = scmp.eq.s32.totalorder %s27, 0
      %p48 = por %p46, %p47
      %p49 = scmp.ne.s32.totalorder %s35, %s36
      %p50 = scmp.eq.s32.totalorder %s28, 1
      %p51 = por %p49, %p50
      %p53 = scmp.ne.s32.totalorder %s36, %s52
      %p54 = scmp.eq.s32.totalorder %s28, 0
      %p55 = por %p53, %p54
      %s57 = sadd.s32 %s56, 1
      %p60 = scmp.eq.s32.totalorder %s22, 1
      %p61 = scmp.ne.s32.totalorder %s56, %s58
      %p62 = scmp.eq.s32.totalorder %s22, 0
      %p63 = por %p61, %p62
      %p64 = scmp.ne.s32.totalorder %s56, %s58
      %p65 = scmp.eq.s32.totalorder %s27, 1
      %p66 = por %p64, %p65
      %p67 = scmp.ne.s32.totalorder %s58, %s59
      %p68 = scmp.eq.s32.totalorder %s27, 0
      %p69 = por %p67, %p68
      %p70 = scmp.ne.s32.totalorder %s58, %s59
      %p71 = scmp.eq.s32.totalorder %s28, 1
      %p72 = por %p70, %p71
      %p74 = scmp.ne.s32.totalorder %s59, %s73
      %p75 = scmp.eq.s32.totalorder %s28, 0
      %p76 = por %p74, %p75
      %s78 = sadd.s32 %s77, 1
      %p81 = scmp.eq.s32.totalorder %s22, 1
      %p82 = scmp.ne.s32.totalorder %s77, %s79
      %p83 = scmp.eq.s32.totalorder %s22, 0
      %p84 = por %p82, %p83
      %p85 = scmp.ne.s32.totalorder %s77, %s79
      %p86 = scmp.eq.s32.totalorder %s27, 1
      %p87 = por %p85, %p86
      %p88 = scmp.ne.s32.totalorder %s79, %s80
      %p89 = scmp.eq.s32.totalorder %s27, 0
      %p90 = por %p88, %p89
      %p91 = scmp.ne.s32.totalorder %s79, %s80
      %p92 = scmp.eq.s32.totalorder %s28, 1
      %p93 = por %p91, %p92
      %p95 = scmp.ne.s32.totalorder %s80, %s94
      %p96 = scmp.eq.s32.totalorder %s28, 0
      %p97 = por %p95, %p96
      %s99 = sadd.s32 %s98, 1
      %p102 = scmp.eq.s32.totalorder %s22, 1
      %p103 = scmp.ne.s32.totalorder %s98, %s100
      %p104 = scmp.eq.s32.totalorder %s22, 0
      %p105 = por %p103, %p104
      %p106 = scmp.ne.s32.totalorder %s98, %s100
      %p107 = scmp.eq.s32.totalorder %s27, 1
      %p108 = por %p106, %p107
      %p109 = scmp.ne.s32.totalorder %s100, %s101
      %p110 = scmp.eq.s32.totalorder %s27, 0
      %p111 = por %p109, %p110
      %p112 = scmp.ne.s32.totalorder %s100, %s101
      %p113 = scmp.eq.s32.totalorder %s28, 1
      %p114 = por %p112, %p113
      %p116 = scmp.ne.s32.totalorder %s101, %s115
      %p117 = scmp.eq.s32.totalorder %s28, 0
      %p118 = por %p116, %p117
      %s120 = sadd.s32 %s119, 1
      %p123 = scmp.eq.s32.totalorder %s22, 1
      %p124 = scmp.ne.s32.totalorder %s119, %s121
      %p125 = scmp.eq.s32.totalorder %s22, 0
      %p126 = por %p124, %p125
      %p127 = scmp.ne.s32.totalorder %s119, %s121
      %p128 = scmp.eq.s32.totalorder %s27, 1
      %p129 = por %p127, %p128
      %p130 = scmp.ne.s32.totalorder %s121, %s122
      %p131 = scmp.eq.s32.totalorder %s27, 0
      %p132 = por %p130, %p131
      %p133 = scmp.ne.s32.totalorder %s121, %s122
      %p134 = scmp.eq.s32.totalorder %s28, 1
      %p135 = por %p133, %p134
      %p137 = scmp.ne.s32.totalorder %s122, %s136
      %p138 = scmp.eq.s32.totalorder %s28, 0
      %p139 = por %p137, %p138
      %s141 = sadd.s32 %s140, 1
      %p144 = scmp.eq.s32.totalorder %s22, 1
      %p145 = scmp.ne.s32.totalorder %s140, %s142
      %p146 = scmp.eq.s32.totalorder %s22, 0
      %p147 = por %p145, %p146
      %p148 = scmp.ne.s32.totalorder %s140, %s142
      %p149 = scmp.eq.s32.totalorder %s27, 1
      %p150 = por %p148, %p149
      %p151 = scmp.ne.s32.totalorder %s142, %s143
      %p152 = scmp.eq.s32.totalorder %s27, 0
      %p153 = por %p151, %p152
      %p154 = scmp.ne.s32.totalorder %s142, %s143
      %p155 = scmp.eq.s32.totalorder %s28, 1
      %p156 = por %p154, %p155
      %p158 = scmp.ne.s32.totalorder %s143, %s157
      %p159 = scmp.eq.s32.totalorder %s28, 0
      %p160 = por %p158, %p159
      %s162 = sadd.s32 %s161, 1
      %p165 = scmp.eq.s32.totalorder %s22, 1
      %p166 = scmp.ne.s32.totalorder %s161, %s163
      %p167 = scmp.eq.s32.totalorder %s22, 0
      %p168 = por %p166, %p167
      %p169 = scmp.ne.s32.totalorder %s161, %s163
      %p170 = scmp.eq.s32.totalorder %s27, 1
      %p171 = por %p169, %p170
      %p172 = scmp.ne.s32.totalorder %s163, %s164
      %p173 = scmp.eq.s32.totalorder %s27, 0
      %p174 = por %p172, %p173
      %p175 = scmp.ne.s32.totalorder %s163, %s164
      %p176 = scmp.eq.s32.totalorder %s28, 1
      %p177 = por %p175, %p176
      %p179 = scmp.ne.s32.totalorder %s164, %s178
      %p180 = scmp.eq.s32.totalorder %s28, 0
      %p181 = por %p179, %p180
      %s183 = sadd.s32 %s182, 1
      %p186 = scmp.eq.s32.totalorder %s22, 1
      %p187 = scmp.ne.s32.totalorder %s182, %s184
      %p188 = scmp.eq.s32.totalorder %s22, 0
      %p189 = por %p187, %p188
      %p190 = scmp.ne.s32.totalorder %s182, %s184
      %p191 = scmp.eq.s32.totalorder %s27, 1
      %p192 = por %p190, %p191
      %p193 = scmp.ne.s32.totalorder %s184, %s185
      %p194 = scmp.eq.s32.totalorder %s27, 0
      %p195 = por %p193, %p194
      %p196 = scmp.ne.s32.totalorder %s184, %s185
      %p197 = scmp.eq.s32.totalorder %s28, 1
      %p198 = por %p196, %p197
      %p200 = scmp.ne.s32.totalorder %s185, %s199
      %p201 = scmp.eq.s32.totalorder %s28, 0
      %p202 = por %p200, %p201
      %s204 = sadd.s32 %s203, 1
      %p207 = scmp.eq.s32.totalorder %s22, 1
      %p208 = scmp.ne.s32.totalorder %s203, %s205
      %p209 = scmp.eq.s32.totalorder %s22, 0
      %p210 = por %p208, %p209
      %p211 = scmp.ne.s32.totalorder %s203, %s205
      %p212 = scmp.eq.s32.totalorder %s27, 1
      %p213 = por %p211, %p212
      %p214 = scmp.ne.s32.totalorder %s205, %s206
      %p215 = scmp.eq.s32.totalorder %s27, 0
      %p216 = por %p214, %p215
      %p217 = scmp.ne.s32.totalorder %s205, %s206
      %p218 = scmp.eq.s32.totalorder %s28, 1
      %p219 = por %p217, %p218
      %p221 = scmp.ne.s32.totalorder %s206, %s220
      %p222 = scmp.eq.s32.totalorder %s28, 0
      %p223 = por %p221, %p222
      %s225 = sadd.s32 %s224, 1
      %p228 = scmp.eq.s32.totalorder %s22, 1
      %p229 = scmp.ne.s32.totalorder %s224, %s226
      %p230 = scmp.eq.s32.totalorder %s22, 0
      %p231 = por %p229, %p230
      %p232 = scmp.ne.s32.totalorder %s224, %s226
      %p233 = scmp.eq.s32.totalorder %s27, 1
      %p234 = por %p232, %p233
      %p235 = scmp.ne.s32.totalorder %s226, %s227
      %p236 = scmp.eq.s32.totalorder %s27, 0
      %p237 = por %p235, %p236
      %p238 = scmp.ne.s32.totalorder %s226, %s227
      %p239 = scmp.eq.s32.totalorder %s28, 1
      %p240 = por %p238, %p239
      %p242 = scmp.ne.s32.totalorder %s227, %s241
      %p243 = scmp.eq.s32.totalorder %s28, 0
      %p244 = por %p242, %p243
      %s246 = sadd.s32 %s245, 1
      %p249 = scmp.eq.s32.totalorder %s22, 1
      %p250 = scmp.ne.s32.totalorder %s245, %s247
      %p251 = scmp.eq.s32.totalorder %s22, 0
      %p252 = por %p250, %p251
      %p253 = scmp.ne.s32.totalorder %s245, %s247
      %p254 = scmp.eq.s32.totalorder %s27, 1
      %p255 = por %p253, %p254
      %p256 = scmp.ne.s32.totalorder %s247, %s248
      %p257 = scmp.eq.s32.totalorder %s27, 0
      %p258 = por %p256, %p257
      %p259 = scmp.ne.s32.totalorder %s247, %s248
      %p260 = scmp.eq.s32.totalorder %s28, 1
      %p261 = por %p259, %p260
      %p263 = scmp.ne.s32.totalorder %s248, %s262
      %p264 = scmp.eq.s32.totalorder %s28, 0
      %p265 = por %p263, %p264
      %s267 = sadd.s32 %s266, 1
      %p270 = scmp.eq.s32.totalorder %s22, 1
      %p271 = scmp.ne.s32.totalorder %s266, %s268
      %p272 = scmp.eq.s32.totalorder %s22, 0
      %p273 = por %p271, %p272
      %p274 = scmp.ne.s32.totalorder %s266, %s268
      %p275 = scmp.eq.s32.totalorder %s27, 1
      %p276 = por %p274, %p275
      %p277 = scmp.ne.s32.totalorder %s268, %s269
      %p278 = scmp.eq.s32.totalorder %s27, 0
      %p279 = por %p277, %p278
      %p280 = scmp.ne.s32.totalorder %s268, %s269
      %p281 = scmp.eq.s32.totalorder %s28, 1
      %p282 = por %p280, %p281
      %p284 = scmp.ne.s32.totalorder %s269, %s283
      %p285 = scmp.eq.s32.totalorder %s28, 0
      %p286 = por %p284, %p285
      %s288 = sadd.s32 %s287, 1
      %p291 = scmp.eq.s32.totalorder %s22, 1
      %p292 = scmp.ne.s32.totalorder %s287, %s289
      %p293 = scmp.eq.s32.totalorder %s22, 0
      %p294 = por %p292, %p293
      %p295 = scmp.ne.s32.totalorder %s287, %s289
      %p296 = scmp.eq.s32.totalorder %s27, 1
      %p297 = por %p295, %p296
      %p298 = scmp.ne.s32.totalorder %s289, %s290
      %p299 = scmp.eq.s32.totalorder %s27, 0
      %p300 = por %p298, %p299
      %p301 = scmp.ne.s32.totalorder %s289, %s290
      %p302 = scmp.eq.s32.totalorder %s28, 1
      %p303 = por %p301, %p302
      %p305 = scmp.ne.s32.totalorder %s290, %s304
      %p306 = scmp.eq.s32.totalorder %s28, 0
      %p307 = por %p305, %p306
      %s308 = ssub.s32 %s22, %s29
      %p309 = scmp.eq.s32.totalorder %s308, 0
      %s311 = sadd.s32 %s310, 1
      %s312 = scalar_select %p309, %s310, %s311
      %p315 = pneg %p309
      %p316 = scmp.eq.s32.totalorder %s22, 1
      %p317 = por %p315, %p316
      %p318 = scmp.ne.s32.totalorder %s310, %s313
      %p319 = scmp.eq.s32.totalorder %s22, 0
      %p320 = por %p318, %p319
      %p321 = scmp.ne.s32.totalorder %s310, %s313
      %p322 = scmp.eq.s32.totalorder %s27, 1
      %p323 = por %p321, %p322
      %p324 = scmp.ne.s32.totalorder %s313, %s314
      %p325 = scmp.eq.s32.totalorder %s27, 0
      %p326 = por %p324, %p325
      %p327 = scmp.ne.s32.totalorder %s313, %s314
      %p328 = scmp.eq.s32.totalorder %s28, 1
      %p329 = por %p327, %p328
      %p331 = scmp.ne.s32.totalorder %s314, %s330
      %p332 = scmp.eq.s32.totalorder %s28, 0
      %p333 = por %p331, %p332
      %p334 = scmp.le.s32.totalorder 1, %s22
      %p335 = scmp.lt.s32.totalorder %s22, 3
      %p336 = pnand %p334, %p335
      %p337 = pneg %p336
      // Predicated region
      $region9: #{tpu_custom_call.1} parent=5 // pred_check
        _
      $region10: #{tpu_custom_call.1} parent=5 // pred_check_branch
        %339 = sbr.rel (%p336) target = $region12
      $region11: #{tpu_custom_call.1} parent=5 // pred_region
        %s340 = ssub.s32 %s22, 1
        // Predicated region
        $region13: #{tpu_custom_call.1} parent=11 // pred_check
          %p341 = pneg %p69
        $region14: #{tpu_custom_call.1} parent=11 // pred_check_branch
          %343 = sbr.rel (%p341) target = $region16
        $region15: #{tpu_custom_call.1} parent=11 // pred_region
          _
        $region16: #{tpu_custom_call.1} parent=11 // pred_fallthru
          _
        // Predicated region
        $region17: #{tpu_custom_call.1} parent=11 // pred_check
          %p344 = pneg %p90
        $region18: #{tpu_custom_call.1} parent=11 // pred_check_branch
          %346 = sbr.rel (%p344) target = $region20
        $region19: #{tpu_custom_call.1} parent=11 // pred_region
          _
        $region20: #{tpu_custom_call.1} parent=11 // pred_fallthru
          _
        // Predicated region
        $region21: #{tpu_custom_call.1} parent=11 // pred_check
          %p347 = pneg %p111
        $region22: #{tpu_custom_call.1} parent=11 // pred_check_branch
          %349 = sbr.rel (%p347) target = $region24
        $region23: #{tpu_custom_call.1} parent=11 // pred_region
          _
        $region24: #{tpu_custom_call.1} parent=11 // pred_fallthru
          _
        // Predicated region
        $region25: #{tpu_custom_call.1} parent=11 // pred_check
          %p350 = pneg %p132
        $region26: #{tpu_custom_call.1} parent=11 // pred_check_branch
          %352 = sbr.rel (%p350) target = $region28
        $region27: #{tpu_custom_call.1} parent=11 // pred_region
          _
        $region28: #{tpu_custom_call.1} parent=11 // pred_fallthru
          _
        // Predicated region
        $region29: #{tpu_custom_call.1} parent=11 // pred_check
          %p353 = pneg %p153
        $region30: #{tpu_custom_call.1} parent=11 // pred_check_branch
          %355 = sbr.rel (%p353) target = $region32
        $region31: #{tpu_custom_call.1} parent=11 // pred_region
          _
        $region32: #{tpu_custom_call.1} parent=11 // pred_fallthru
          _
        // Predicated region
        $region33: #{tpu_custom_call.1} parent=11 // pred_check
          %p356 = pneg %p174
        $region34: #{tpu_custom_call.1} parent=11 // pred_check_branch
          %358 = sbr.rel (%p356) target = $region36
        $region35: #{tpu_custom_call.1} parent=11 // pred_region
          _
        $region36: #{tpu_custom_call.1} parent=11 // pred_fallthru
          _
        // Predicated region
        $region37: #{tpu_custom_call.1} parent=11 // pred_check
          %p359 = pneg %p195
        $region38: #{tpu_custom_call.1} parent=11 // pred_check_branch
          %361 = sbr.rel (%p359) target = $region40
        $region39: #{tpu_custom_call.1} parent=11 // pred_region
          _
        $region40: #{tpu_custom_call.1} parent=11 // pred_fallthru
          _
        // Predicated region
        $region41: #{tpu_custom_call.1} parent=11 // pred_check
          %p362 = pneg %p216
        $region42: #{tpu_custom_call.1} parent=11 // pred_check_branch
          %364 = sbr.rel (%p362) target = $region44
        $region43: #{tpu_custom_call.1} parent=11 // pred_region
          _
        $region44: #{tpu_custom_call.1} parent=11 // pred_fallthru
          _
        // Predicated region
        $region45: #{tpu_custom_call.1} parent=11 // pred_check
          %p365 = pneg %p237
        $region46: #{tpu_custom_call.1} parent=11 // pred_check_branch
          %367 = sbr.rel (%p365) target = $region48
        $region47: #{tpu_custom_call.1} parent=11 // pred_region
          _
        $region48: #{tpu_custom_call.1} parent=11 // pred_fallthru
          _
        // Predicated region
        $region49: #{tpu_custom_call.1} parent=11 // pred_check
          %p368 = pneg %p258
        $region50: #{tpu_custom_call.1} parent=11 // pred_check_branch
          %370 = sbr.rel (%p368) target = $region52
        $region51: #{tpu_custom_call.1} parent=11 // pred_region
          _
        $region52: #{tpu_custom_call.1} parent=11 // pred_fallthru
          _
        // Predicated region
        $region53: #{tpu_custom_call.1} parent=11 // pred_check
          %p371 = pneg %p279
        $region54: #{tpu_custom_call.1} parent=11 // pred_check_branch
          %373 = sbr.rel (%p371) target = $region56
        $region55: #{tpu_custom_call.1} parent=11 // pred_region
          _
        $region56: #{tpu_custom_call.1} parent=11 // pred_fallthru
          _
        // Predicated region
        $region57: #{tpu_custom_call.1} parent=11 // pred_check
          %p374 = pneg %p300
        $region58: #{tpu_custom_call.1} parent=11 // pred_check_branch
          %376 = sbr.rel (%p374) target = $region60
        $region59: #{tpu_custom_call.1} parent=11 // pred_region
          _
        $region60: #{tpu_custom_call.1} parent=11 // pred_fallthru
          _
      $region12: #{tpu_custom_call.1} parent=5 // pred_fallthru
        _
      %p377 = scmp.lt.s32.totalorder %s22, 2
      // Predicated region
      $region61: #{tpu_custom_call.1} parent=5 // pred_check
        %p378 = pneg %p377
      $region62: #{tpu_custom_call.1} parent=5 // pred_check_branch
        %380 = sbr.rel (%p378) target = $region64
      $region63: #{tpu_custom_call.1} parent=5 // pred_region
        // Predicated region
        $region65: #{tpu_custom_call.1} parent=63 // pred_check
          %p381 = pneg %p42
        $region66: #{tpu_custom_call.1} parent=63 // pred_check_branch
          %383 = sbr.rel (%p381) target = $region68
        $region67: #{tpu_custom_call.1} parent=63 // pred_region
          %p384 = scmp.lt.s32.totalorder %s22, 1
          %s385 = scalar_select %p384, %s22, 1
          %s386 = smul.addr %s385, 8
          %s387 = scalar_lea.vmem %s0, %s386
        $region68: #{tpu_custom_call.1} parent=63 // pred_fallthru
          _
      $region64: #{tpu_custom_call.1} parent=5 // pred_fallthru
        _
      %p388 = scmp.le.s32.totalorder 1, %s22
      %p389 = scmp.lt.s32.totalorder %s22, 3
      %p390 = pnand %p388, %p389
      %p391 = pneg %p390
      // Predicated region
      $region69: #{tpu_custom_call.1} parent=5 // pred_check
        _
      $region70: #{tpu_custom_call.1} parent=5 // pred_check_branch
        %393 = sbr.rel (%p390) target = $region72
      $region71: #{tpu_custom_call.1} parent=5 // pred_region
        %s394 = ssub.s32 %s22, 1
        %p395 = scmp.lt.s32.totalorder %s27, 1
        %s396 = scalar_select %p395, %s27, 1
        %s397 = smul.addr %s396, 8
        %s398 = scalar_lea.vmem %s0, %s397
        %p399 = pneg %p48
        %p400 = pneg %p45
        %p401 = pneg %p69
        %p402 = pneg %p66
        %p403 = pneg %p90
        %p404 = pneg %p87
        %p405 = pneg %p111
        %p406 = pneg %p108
        %p407 = pneg %p132
        %p408 = pneg %p129
        %p409 = pneg %p153
        %p410 = pneg %p150
        %p411 = pneg %p174
        %p412 = pneg %p171
        %p413 = pneg %p195
        %p414 = pneg %p192
        %p415 = pneg %p216
        %p416 = pneg %p213
        %p417 = pneg %p237
        %p418 = pneg %p234
        %p419 = pneg %p258
        %p420 = pneg %p255
        %p421 = pneg %p279
        %p422 = pneg %p276
        %p423 = pneg %p300
        %p424 = pneg %p297
        %p425 = pneg %p326
        %p426 = pneg %p323
        %s427 = sand.u32 %s313, 1
        %s428 = scalar_lea.sflag [#allocation3], %s427
        %s429 = sand.u32 %s313, 1
        %s430 = smul.addr %s429, 8
        %s431 = scalar_lea.vmem [#allocation2], %s430
        %p432 = scmp.lt.s32.totalorder %s27, 1
        %s433 = scalar_select %p432, %s27, 1
        %s434 = smul.addr %s433, 8
        %s435 = scalar_lea.vmem %s0, %s434
        %v437 = vld [vmem:[%s435] sm:$0xff]
        %v438 = vld [vmem:[%s1] sm:$0x1]
        %v439 = vld [vmem:[%s2] sm:$0x1]
        %vm440 = vcmask 261120
        %v441 = vsel %vm440, %v437, 0.0
        %442 = vadd.xlane.f32.xlu0 %v441
        %v443 = vpop.xlane.xlu0 %442
        %v444 = vrcp.pop 32.0
        %v445 = vmul.f32 %v443, %v444
        %v446 = vsub.f32 %v437, %v445
        %v447 = vmul.f32 %v446, %v446
        %v448 = vsel %vm440, %v447, 0.0
        %449 = vadd.xlane.f32.xlu0 %v448
        %v450 = vpop.xlane.xlu0 %449
        %v451 = vmul.f32 %v450, %v444
        %v452 = vadd.f32 %v451, 1e-05
        %v453 = vrsqrt.pop %v452
        %v454 = vmul.f32 %v446, %v453
        %v456 = vlaneseq
        %v457 = vshrl.u32 %v456, 7
        %v458 = vsub.s32 0, %v457
        %v459 = vrot.slane %v438, %v458
        %v461 = vmul.f32 %v454, %v459
        %v463 = vlaneseq
        %v464 = vshrl.u32 %v463, 7
        %v465 = vsub.s32 0, %v464
        %v466 = vrot.slane %v439, %v465
        %v468 = vadd.f32 %v461, %v466
        %v469 = vpack.c.bf16 %v468, %v468
        %v470 = vld [vmem:[%s3] sm:$0xf]
        %v471 = vld [vmem:[%s3 + $0x4] sm:$0xf]
        %v472 = vld [vmem:[%s3 + $0x8] sm:$0xf]
        %v473 = vld [vmem:[%s3 + $0xc] sm:$0xf]
        %v474 = vld [vmem:[%s4] sm:$0x1]
        %v476 = vlaneseq
        %v477 = vshrl.u32 %v476, 7
        %v478 = vsub.s32 0, %v477
        %v479 = vrot.slane %v474, %v478
        %v485 = vunpack.c.l.b16 %v470
        %v486 = vunpack.c.l.b16 %v471
        %v487 = vunpack.c.l.b16 %v472
        %v488 = vunpack.c.l.b16 %v473
        %v489 = vpack.c.b16 %v486, %v485
        %v490 = vpack.c.b16 %v488, %v487
        %v494 = vsel %vm440, %v469, 0
        %496 = vmatprep.subr.bf16.mxu0 0
        %497 = vmatpush1.bf16.msra.mxu0 0
        %498 = vmatprep.subr.bf16.mxu0 0
        %499 = vmatpush1.bf16.msra.mxu0 0
        %500 = vmatprep.subr.bf16.mxu0 0
        %501 = vmatpush1.bf16.msra.mxu0 0
        %502 = vmatprep.subr.bf16.mxu0 0
        %503 = vmatpush1.bf16.msra.mxu0 0
        %504 = vmatprep.subr.bf16.mxu0 0
        %505 = vmatpush1.bf16.msra.mxu0 0
        %506 = vmatprep.subr.bf16.mxu0 0
        %507 = vmatpush1.bf16.msra.mxu0 0
        %508 = vmatprep.subr.bf16.mxu0 0
        %509 = vmatpush1.bf16.msra.mxu0 %v490
        %510 = vmatprep.subr.bf16.mxu0 0
        %511 = vmatpush1.bf16.msra.mxu0 %v489
        %512 = vmatprep.subr.bf16.mxu0 0
        %513 = vmatpush2.bf16.msra.mxu0 0
        %514 = vmatprep.subr.bf16.mxu0 0
        %515 = vmatpush2.bf16.msra.mxu0 0
        %516 = vmatprep.subr.bf16.mxu0 0
        %517 = vmatpush2.bf16.msra.mxu0 0
        %518 = vmatprep.subr.bf16.mxu0 0
        %519 = vmatpush2.bf16.msra.mxu0 0
        %520 = vmatprep.subr.bf16.mxu0 0
        %521 = vmatpush2.bf16.msra.mxu0 0
        %522 = vmatprep.subr.bf16.mxu0 0
        %523 = vmatpush2.bf16.msra.mxu0 0
        %524 = vmatprep.subr.bf16.mxu0 0
        %525 = vmatpush2.bf16.msra.mxu0 0
        %526 = vmatprep.subr.bf16.mxu0 0
        %527 = vmatpush2.bf16.msra.mxu0 0
        %528 = vmatprep.mubr.bf16.mxu0 0
        %529 = vmatmul.mubr.bf16.gmra.mxu0 %v494
        %v530 = vpop.f32.mrf.mxu0
        %v531 = vadd.f32 %v479, %v530
        %v532 = vpop.f32.mrf.mxu0
        %v533 = vpop.f32.mrf.mxu0
        %v534 = vpop.f32.mrf.mxu0
        %535 = vdwg.mxu0
        %v536 = vlaneseq
        %v537 = vshrl.u32 %v536, 7
        %v538 = vlaneseq
        %v539 = vand.u32 %v538, 127
        %vm540 = vcmp.le.s32.totalorder %v539, %v537
        %v541 = vpack.c.bf16 %v531, %v531
        %543 = vrot.lane.b32.xlu0 %v541, 96
        %v544 = vpop.permute.xlu0 %543
        %vm545 = vcmask 64512
        %v547 = vsel %vm545, %v541, 0
        %v550 = vsel %vm545, %v544, 0
        %552 = vmatprep.subr.bf16.mxu0 0
        %553 = vmatpush1.bf16.xpose.msra.mxu0 0
        %554 = vmatprep.subr.bf16.mxu0 0
        %555 = vmatpush1.bf16.xpose.msra.mxu0 0
        %556 = vmatprep.subr.bf16.mxu0 0
        %557 = vmatpush1.bf16.xpose.msra.mxu0 0
        %558 = vmatprep.subr.bf16.mxu0 0
        %559 = vmatpush1.bf16.xpose.msra.mxu0 0
        %560 = vmatprep.subr.bf16.mxu0 0
        %561 = vmatpush1.bf16.xpose.msra.mxu0 0
        %562 = vmatprep.subr.bf16.mxu0 0
        %563 = vmatpush1.bf16.xpose.msra.mxu0 0
        %564 = vmatprep.subr.bf16.mxu0 0
        %565 = vmatpush1.bf16.xpose.msra.mxu0 0
        %566 = vmatprep.subr.bf16.mxu0 0
        %567 = vmatpush1.bf16.xpose.msra.mxu0 %v550
        %568 = vmatprep.subr.bf16.mxu0 0
        %569 = vmatpush2.bf16.xpose.msra.mxu0 0
        %570 = vmatprep.subr.bf16.mxu0 0
        %571 = vmatpush2.bf16.xpose.msra.mxu0 0
        %572 = vmatprep.subr.bf16.mxu0 0
        %573 = vmatpush2.bf16.xpose.msra.mxu0 0
        %574 = vmatprep.subr.bf16.mxu0 0
        %575 = vmatpush2.bf16.xpose.msra.mxu0 0
        %576 = vmatprep.subr.bf16.mxu0 0
        %577 = vmatpush2.bf16.xpose.msra.mxu0 0
        %578 = vmatprep.subr.bf16.mxu0 0
        %579 = vmatpush2.bf16.xpose.msra.mxu0 0
        %580 = vmatprep.subr.bf16.mxu0 0
        %581 = vmatpush2.bf16.xpose.msra.mxu0 0
        %582 = vmatprep.subr.bf16.mxu0 0
        %583 = vmatpush2.bf16.xpose.msra.mxu0 0
        %584 = vmatprep.mubr.bf16.mxu0 0
        %585 = vmatmul.mubr.bf16.gmra.mxu0 %v547
        %v586 = vpop.f32.mrf.mxu0
        %v587 = vadd.f32 0.0, %v586
        %v588 = vpop.f32.mrf.mxu0
        %v589 = vpop.f32.mrf.mxu0
        %v590 = vpop.f32.mrf.mxu0
        %591 = vdwg.mxu0
        %v592 = vsel %vm540, %v587, -inf
        %v593 = vsel %vm545, %v592, -inf
        %594 = vmax.xlane.f32.xlu0 %v593
        %v595 = vpop.xlane.xlu0 %594
        %v596 = vsub.f32 %v592, %v595
        %v597 = vmul.f32 %v596, 1.442695
        %v598 = vpow.pop %v597
        %v599 = vsel %vm545, %v598, 0.0
        %600 = vadd.xlane.f32.xlu0 %v599
        %v601 = vpop.xlane.xlu0 %600
        %v602 = vrcp.pop %v601
        %v603 = vmul.f32 %v598, %v602
        %v604 = vpack.c.bf16 %v603, %v603
        %605 = vrot.lane.b32.xlu0 %v541, 64
        %v606 = vpop.permute.xlu0 %605
        %v608 = vsel %vm545, %v604, 0
        %vm610 = vcmask 1043456
        %v612 = vsel %vm610, %v606, 0
        %614 = vmatprep.subr.bf16.mxu0 0
        %615 = vmatpush1.bf16.msra.mxu0 0
        %616 = vmatprep.subr.bf16.mxu0 0
        %617 = vmatpush1.bf16.msra.mxu0 0
        %618 = vmatprep.subr.bf16.mxu0 0
        %619 = vmatpush1.bf16.msra.mxu0 0
        %620 = vmatprep.subr.bf16.mxu0 0
        %621 = vmatpush1.bf16.msra.mxu0 0
        %622 = vmatprep.subr.bf16.mxu0 0
        %623 = vmatpush1.bf16.msra.mxu0 0
        %624 = vmatprep.subr.bf16.mxu0 0
        %625 = vmatpush1.bf16.msra.mxu0 0
        %626 = vmatprep.subr.bf16.mxu0 0
        %627 = vmatpush1.bf16.msra.mxu0 0
        %628 = vmatprep.subr.bf16.mxu0 0
        %629 = vmatpush1.bf16.msra.mxu0 %v612
        %630 = vmatprep.subr.bf16.mxu0 0
        %631 = vmatpush2.bf16.msra.mxu0 0
        %632 = vmatprep.subr.bf16.mxu0 0
        %633 = vmatpush2.bf16.msra.mxu0 0
        %634 = vmatprep.subr.bf16.mxu0 0
        %635 = vmatpush2.bf16.msra.mxu0 0
        %636 = vmatprep.subr.bf16.mxu0 0
        %637 = vmatpush2.bf16.msra.mxu0 0
        %638 = vmatprep.subr.bf16.mxu0 0
        %639 = vmatpush2.bf16.msra.mxu0 0
        %640 = vmatprep.subr.bf16.mxu0 0
        %641 = vmatpush2.bf16.msra.mxu0 0
        %642 = vmatprep.subr.bf16.mxu0 0
        %643 = vmatpush2.bf16.msra.mxu0 0
        %644 = vmatprep.subr.bf16.mxu0 0
        %645 = vmatpush2.bf16.msra.mxu0 0
        %646 = vmatprep.mubr.bf16.mxu0 0
        %647 = vmatmul.mubr.bf16.gmra.mxu0 %v608
        %v648 = vpop.f32.mrf.mxu0
        %v649 = vadd.f32 0.0, %v648
        %v650 = vpop.f32.mrf.mxu0
        %v651 = vpop.f32.mrf.mxu0
        %v652 = vpop.f32.mrf.mxu0
        %653 = vdwg.mxu0
        %v654 = vpack.c.bf16 %v649, %v649
        %v655 = vld [vmem:[%s5] sm:$0xf]
        %656 = vrot.lane.b32.xlu0 %v541, 120
        %v657 = vpop.permute.xlu0 %656
        %658 = vrot.lane.b32.xlu0 %v541, 88
        %v659 = vpop.permute.xlu0 %658
        %v661 = vsel %vm545, %v657, 0
        %v664 = vsel %vm545, %v659, 0
        %666 = vmatprep.subr.bf16.mxu0 0
        %667 = vmatpush1.bf16.xpose.msra.mxu0 0
        %668 = vmatprep.subr.bf16.mxu0 0
        %669 = vmatpush1.bf16.xpose.msra.mxu0 0
        %670 = vmatprep.subr.bf16.mxu0 0
        %671 = vmatpush1.bf16.xpose.msra.mxu0 0
        %672 = vmatprep.subr.bf16.mxu0 0
        %673 = vmatpush1.bf16.xpose.msra.mxu0 0
        %674 = vmatprep.subr.bf16.mxu0 0
        %675 = vmatpush1.bf16.xpose.msra.mxu0 0
        %676 = vmatprep.subr.bf16.mxu0 0
        %677 = vmatpush1.bf16.xpose.msra.mxu0 0
        %678 = vmatprep.subr.bf16.mxu0 0
        %679 = vmatpush1.bf16.xpose.msra.mxu0 0
        %680 = vmatprep.subr.bf16.mxu0 0
        %681 = vmatpush1.bf16.xpose.msra.mxu0 %v664
        %682 = vmatprep.subr.bf16.mxu0 0
        %683 = vmatpush2.bf16.xpose.msra.mxu0 0
        %684 = vmatprep.subr.bf16.mxu0 0
        %685 = vmatpush2.bf16.xpose.msra.mxu0 0
        %686 = vmatprep.subr.bf16.mxu0 0
        %687 = vmatpush2.bf16.xpose.msra.mxu0 0
        %688 = vmatprep.subr.bf16.mxu0 0
        %689 = vmatpush2.bf16.xpose.msra.mxu0 0
        %690 = vmatprep.subr.bf16.mxu0 0
        %691 = vmatpush2.bf16.xpose.msra.mxu0 0
        %692 = vmatprep.subr.bf16.mxu0 0
        %693 = vmatpush2.bf16.xpose.msra.mxu0 0
        %694 = vmatprep.subr.bf16.mxu0 0
        %695 = vmatpush2.bf16.xpose.msra.mxu0 0
        %696 = vmatprep.subr.bf16.mxu0 0
        %697 = vmatpush2.bf16.xpose.msra.mxu0 0
        %698 = vmatprep.mubr.bf16.mxu0 0
        %699 = vmatmul.mubr.bf16.gmra.mxu0 %v661
        %v700 = vpop.f32.mrf.mxu0
        %v701 = vadd.f32 0.0, %v700
        %v702 = vpop.f32.mrf.mxu0
        %v703 = vpop.f32.mrf.mxu0
        %v704 = vpop.f32.mrf.mxu0
        %705 = vdwg.mxu0
        %v706 = vsel %vm540, %v701, -inf
        %v707 = vsel %vm545, %v706, -inf
        %708 = vmax.xlane.f32.xlu0 %v707
        %v709 = vpop.xlane.xlu0 %708
        %v710 = vsub.f32 %v706, %v709
        %v711 = vmul.f32 %v710, 1.442695
        %v712 = vpow.pop %v711
        %v713 = vsel %vm545, %v712, 0.0
        %714 = vadd.xlane.f32.xlu0 %v713
        %v715 = vpop.xlane.xlu0 %714
        %v716 = vrcp.pop %v715
        %v717 = vmul.f32 %v712, %v716
        %v718 = vpack.c.bf16 %v717, %v717
        %719 = vrot.lane.b32.xlu0 %v541, 56
        %v720 = vpop.permute.xlu0 %719
        %v722 = vsel %vm545, %v718, 0
        %v725 = vsel %vm610, %v720, 0
        %727 = vmatprep.subr.bf16.mxu0 0
        %728 = vmatpush1.bf16.msra.mxu0 0
        %729 = vmatprep.subr.bf16.mxu0 0
        %730 = vmatpush1.bf16.msra.mxu0 0
        %731 = vmatprep.subr.bf16.mxu0 0
        %732 = vmatpush1.bf16.msra.mxu0 0
        %733 = vmatprep.subr.bf16.mxu0 0
        %734 = vmatpush1.bf16.msra.mxu0 0
        %735 = vmatprep.subr.bf16.mxu0 0
        %736 = vmatpush1.bf16.msra.mxu0 0
        %737 = vmatprep.subr.bf16.mxu0 0
        %738 = vmatpush1.bf16.msra.mxu0 0
        %739 = vmatprep.subr.bf16.mxu0 0
        %740 = vmatpush1.bf16.msra.mxu0 0
        %741 = vmatprep.subr.bf16.mxu0 0
        %742 = vmatpush1.bf16.msra.mxu0 %v725
        %743 = vmatprep.subr.bf16.mxu0 0
        %744 = vmatpush2.bf16.msra.mxu0 0
        %745 = vmatprep.subr.bf16.mxu0 0
        %746 = vmatpush2.bf16.msra.mxu0 0
        %747 = vmatprep.subr.bf16.mxu0 0
        %748 = vmatpush2.bf16.msra.mxu0 0
        %749 = vmatprep.subr.bf16.mxu0 0
        %750 = vmatpush2.bf16.msra.mxu0 0
        %751 = vmatprep.subr.bf16.mxu0 0
        %752 = vmatpush2.bf16.msra.mxu0 0
        %753 = vmatprep.subr.bf16.mxu0 0
        %754 = vmatpush2.bf16.msra.mxu0 0
        %755 = vmatprep.subr.bf16.mxu0 0
        %756 = vmatpush2.bf16.msra.mxu0 0
        %757 = vmatprep.subr.bf16.mxu0 0
        %758 = vmatpush2.bf16.msra.mxu0 0
        %759 = vmatprep.mubr.bf16.mxu0 0
        %760 = vmatmul.mubr.bf16.gmra.mxu0 %v722
        %v761 = vpop.f32.mrf.mxu0
        %v762 = vadd.f32 0.0, %v761
        %v763 = vpop.f32.mrf.mxu0
        %v764 = vpop.f32.mrf.mxu0
        %v765 = vpop.f32.mrf.mxu0
        %766 = vdwg.mxu0
        %v767 = vpack.c.bf16 %v762, %v762
        %v768 = vld [vmem:[%s5 + $0x4] sm:$0xf]
        %v770 = vsel %vm545, %v767, 0
        %v773 = vsel %vm610, %v768, 0
        %775 = vmatprep.subr.bf16.mxu0 0
        %776 = vmatpush1.bf16.msra.mxu0 0
        %777 = vmatprep.subr.bf16.mxu0 0
        %778 = vmatpush1.bf16.msra.mxu0 0
        %779 = vmatprep.subr.bf16.mxu0 0
        %780 = vmatpush1.bf16.msra.mxu0 0
        %781 = vmatprep.subr.bf16.mxu0 0
        %782 = vmatpush1.bf16.msra.mxu0 0
        %783 = vmatprep.subr.bf16.mxu0 0
        %784 = vmatpush1.bf16.msra.mxu0 0
        %785 = vmatprep.subr.bf16.mxu0 0
        %786 = vmatpush1.bf16.msra.mxu0 0
        %787 = vmatprep.subr.bf16.mxu0 0
        %788 = vmatpush1.bf16.msra.mxu0 0
        %789 = vmatprep.subr.bf16.mxu0 0
        %790 = vmatpush1.bf16.msra.mxu0 %v773
        %791 = vmatprep.subr.bf16.mxu0 0
        %792 = vmatpush2.bf16.msra.mxu0 0
        %793 = vmatprep.subr.bf16.mxu0 0
        %794 = vmatpush2.bf16.msra.mxu0 0
        %795 = vmatprep.subr.bf16.mxu0 0
        %796 = vmatpush2.bf16.msra.mxu0 0
        %797 = vmatprep.subr.bf16.mxu0 0
        %798 = vmatpush2.bf16.msra.mxu0 0
        %799 = vmatprep.subr.bf16.mxu0 0
        %800 = vmatpush2.bf16.msra.mxu0 0
        %801 = vmatprep.subr.bf16.mxu0 0
        %802 = vmatpush2.bf16.msra.mxu0 0
        %803 = vmatprep.subr.bf16.mxu0 0
        %804 = vmatpush2.bf16.msra.mxu0 0
        %805 = vmatprep.subr.bf16.mxu0 0
        %806 = vmatpush2.bf16.msra.mxu0 0
        %807 = vmatprep.mubr.bf16.mxu0 0
        %808 = vmatmul.mubr.bf16.gmra.mxu0 %v770
        %v809 = vpop.f32.mrf.mxu0
        %v810 = vadd.f32 0.0, %v809
        %v811 = vpop.f32.mrf.mxu0
        %v812 = vpop.f32.mrf.mxu0
        %v813 = vpop.f32.mrf.mxu0
        %814 = vdwg.mxu0
        %v816 = vsel %vm545, %v654, 0
        %v819 = vsel %vm610, %v655, 0
        %821 = vmatprep.subr.bf16.mxu0 0
        %822 = vmatpush1.bf16.msra.mxu0 0
        %823 = vmatprep.subr.bf16.mxu0 0
        %824 = vmatpush1.bf16.msra.mxu0 0
        %825 = vmatprep.subr.bf16.mxu0 0
        %826 = vmatpush1.bf16.msra.mxu0 0
        %827 = vmatprep.subr.bf16.mxu0 0
        %828 = vmatpush1.bf16.msra.mxu0 0
        %829 = vmatprep.subr.bf16.mxu0 0
        %830 = vmatpush1.bf16.msra.mxu0 0
        %831 = vmatprep.subr.bf16.mxu0 0
        %832 = vmatpush1.bf16.msra.mxu0 0
        %833 = vmatprep.subr.bf16.mxu0 0
        %834 = vmatpush1.bf16.msra.mxu0 0
        %835 = vmatprep.subr.bf16.mxu0 0
        %836 = vmatpush1.bf16.msra.mxu0 %v819
        %837 = vmatprep.subr.bf16.mxu0 0
        %838 = vmatpush2.bf16.msra.mxu0 0
        %839 = vmatprep.subr.bf16.mxu0 0
        %840 = vmatpush2.bf16.msra.mxu0 0
        %841 = vmatprep.subr.bf16.mxu0 0
        %842 = vmatpush2.bf16.msra.mxu0 0
        %843 = vmatprep.subr.bf16.mxu0 0
        %844 = vmatpush2.bf16.msra.mxu0 0
        %845 = vmatprep.subr.bf16.mxu0 0
        %846 = vmatpush2.bf16.msra.mxu0 0
        %847 = vmatprep.subr.bf16.mxu0 0
        %848 = vmatpush2.bf16.msra.mxu0 0
        %849 = vmatprep.subr.bf16.mxu0 0
        %850 = vmatpush2.bf16.msra.mxu0 0
        %851 = vmatprep.subr.bf16.mxu0 0
        %852 = vmatpush2.bf16.msra.mxu0 0
        %853 = vmatprep.mubr.bf16.mxu0 0
        %854 = vmatmul.mubr.bf16.gmra.mxu0 %v816
        %v855 = vpop.f32.mrf.mxu0
        %v856 = vadd.f32 %v810, %v855
        %v857 = vpop.f32.mrf.mxu0
        %v858 = vpop.f32.mrf.mxu0
        %v859 = vpop.f32.mrf.mxu0
        %860 = vdwg.mxu0
        %861 = vrot.lane.b32.xlu0 %v541, 112
        %v862 = vpop.permute.xlu0 %861
        %863 = vrot.lane.b32.xlu0 %v541, 80
        %v864 = vpop.permute.xlu0 %863
        %v866 = vsel %vm545, %v862, 0
        %v869 = vsel %vm545, %v864, 0
        %871 = vmatprep.subr.bf16.mxu0 0
        %872 = vmatpush1.bf16.xpose.msra.mxu0 0
        %873 = vmatprep.subr.bf16.mxu0 0
        %874 = vmatpush1.bf16.xpose.msra.mxu0 0
        %875 = vmatprep.subr.bf16.mxu0 0
        %876 = vmatpush1.bf16.xpose.msra.mxu0 0
        %877 = vmatprep.subr.bf16.mxu0 0
        %878 = vmatpush1.bf16.xpose.msra.mxu0 0
        %879 = vmatprep.subr.bf16.mxu0 0
        %880 = vmatpush1.bf16.xpose.msra.mxu0 0
        %881 = vmatprep.subr.bf16.mxu0 0
        %882 = vmatpush1.bf16.xpose.msra.mxu0 0
        %883 = vmatprep.subr.bf16.mxu0 0
        %884 = vmatpush1.bf16.xpose.msra.mxu0 0
        %885 = vmatprep.subr.bf16.mxu0 0
        %886 = vmatpush1.bf16.xpose.msra.mxu0 %v869
        %887 = vmatprep.subr.bf16.mxu0 0
        %888 = vmatpush2.bf16.xpose.msra.mxu0 0
        %889 = vmatprep.subr.bf16.mxu0 0
        %890 = vmatpush2.bf16.xpose.msra.mxu0 0
        %891 = vmatprep.subr.bf16.mxu0 0
        %892 = vmatpush2.bf16.xpose.msra.mxu0 0
        %893 = vmatprep.subr.bf16.mxu0 0
        %894 = vmatpush2.bf16.xpose.msra.mxu0 0
        %895 = vmatprep.subr.bf16.mxu0 0
        %896 = vmatpush2.bf16.xpose.msra.mxu0 0
        %897 = vmatprep.subr.bf16.mxu0 0
        %898 = vmatpush2.bf16.xpose.msra.mxu0 0
        %899 = vmatprep.subr.bf16.mxu0 0
        %900 = vmatpush2.bf16.xpose.msra.mxu0 0
        %901 = vmatprep.subr.bf16.mxu0 0
        %902 = vmatpush2.bf16.xpose.msra.mxu0 0
        %903 = vmatprep.mubr.bf16.mxu0 0
        %904 = vmatmul.mubr.bf16.gmra.mxu0 %v866
        %v905 = vpop.f32.mrf.mxu0
        %v906 = vadd.f32 0.0, %v905
        %v907 = vpop.f32.mrf.mxu0
        %v908 = vpop.f32.mrf.mxu0
        %v909 = vpop.f32.mrf.mxu0
        %910 = vdwg.mxu0
        %v911 = vsel %vm540, %v906, -inf
        %v912 = vsel %vm545, %v911, -inf
        %913 = vmax.xlane.f32.xlu0 %v912
        %v914 = vpop.xlane.xlu0 %913
        %v915 = vsub.f32 %v911, %v914
        %v916 = vmul.f32 %v915, 1.442695
        %v917 = vpow.pop %v916
        %v918 = vsel %vm545, %v917, 0.0
        %919 = vadd.xlane.f32.xlu0 %v918
        %v920 = vpop.xlane.xlu0 %919
        %v921 = vrcp.pop %v920
        %v922 = vmul.f32 %v917, %v921
        %v923 = vpack.c.bf16 %v922, %v922
        %924 = vrot.lane.b32.xlu0 %v541, 48
        %v925 = vpop.permute.xlu0 %924
        %v927 = vsel %vm545, %v923, 0
        %v930 = vsel %vm610, %v925, 0
        %932 = vmatprep.subr.bf16.mxu0 0
        %933 = vmatpush1.bf16.msra.mxu0 0
        %934 = vmatprep.subr.bf16.mxu0 0
        %935 = vmatpush1.bf16.msra.mxu0 0
        %936 = vmatprep.subr.bf16.mxu0 0
        %937 = vmatpush1.bf16.msra.mxu0 0
        %938 = vmatprep.subr.bf16.mxu0 0
        %939 = vmatpush1.bf16.msra.mxu0 0
        %940 = vmatprep.subr.bf16.mxu0 0
        %941 = vmatpush1.bf16.msra.mxu0 0
        %942 = vmatprep.subr.bf16.mxu0 0
        %943 = vmatpush1.bf16.msra.mxu0 0
        %944 = vmatprep.subr.bf16.mxu0 0
        %945 = vmatpush1.bf16.msra.mxu0 0
        %946 = vmatprep.subr.bf16.mxu0 0
        %947 = vmatpush1.bf16.msra.mxu0 %v930
        %948 = vmatprep.subr.bf16.mxu0 0
        %949 = vmatpush2.bf16.msra.mxu0 0
        %950 = vmatprep.subr.bf16.mxu0 0
        %951 = vmatpush2.bf16.msra.mxu0 0
        %952 = vmatprep.subr.bf16.mxu0 0
        %953 = vmatpush2.bf16.msra.mxu0 0
        %954 = vmatprep.subr.bf16.mxu0 0
        %955 = vmatpush2.bf16.msra.mxu0 0
        %956 = vmatprep.subr.bf16.mxu0 0
        %957 = vmatpush2.bf16.msra.mxu0 0
        %958 = vmatprep.subr.bf16.mxu0 0
        %959 = vmatpush2.bf16.msra.mxu0 0
        %960 = vmatprep.subr.bf16.mxu0 0
        %961 = vmatpush2.bf16.msra.mxu0 0
        %962 = vmatprep.subr.bf16.mxu0 0
        %963 = vmatpush2.bf16.msra.mxu0 0
        %964 = vmatprep.mubr.bf16.mxu0 0
        %965 = vmatmul.mubr.bf16.gmra.mxu0 %v927
        %v966 = vpop.f32.mrf.mxu0
        %v967 = vadd.f32 0.0, %v966
        %v968 = vpop.f32.mrf.mxu0
        %v969 = vpop.f32.mrf.mxu0
        %v970 = vpop.f32.mrf.mxu0
        %971 = vdwg.mxu0
        %v972 = vpack.c.bf16 %v967, %v967
        %v973 = vld [vmem:[%s5 + $0x8] sm:$0xf]
        %v975 = vsel %vm545, %v972, 0
        %v978 = vsel %vm610, %v973, 0
        %980 = vmatprep.subr.bf16.mxu0 0
        %981 = vmatpush1.bf16.msra.mxu0 0
        %982 = vmatprep.subr.bf16.mxu0 0
        %983 = vmatpush1.bf16.msra.mxu0 0
        %984 = vmatprep.subr.bf16.mxu0 0
        %985 = vmatpush1.bf16.msra.mxu0 0
        %986 = vmatprep.subr.bf16.mxu0 0
        %987 = vmatpush1.bf16.msra.mxu0 0
        %988 = vmatprep.subr.bf16.mxu0 0
        %989 = vmatpush1.bf16.msra.mxu0 0
        %990 = vmatprep.subr.bf16.mxu0 0
        %991 = vmatpush1.bf16.msra.mxu0 0
        %992 = vmatprep.subr.bf16.mxu0 0
        %993 = vmatpush1.bf16.msra.mxu0 0
        %994 = vmatprep.subr.bf16.mxu0 0
        %995 = vmatpush1.bf16.msra.mxu0 %v978
        %996 = vmatprep.subr.bf16.mxu0 0
        %997 = vmatpush2.bf16.msra.mxu0 0
        %998 = vmatprep.subr.bf16.mxu0 0
        %999 = vmatpush2.bf16.msra.mxu0 0
        %1000 = vmatprep.subr.bf16.mxu0 0
        %1001 = vmatpush2.bf16.msra.mxu0 0
        %1002 = vmatprep.subr.bf16.mxu0 0
        %1003 = vmatpush2.bf16.msra.mxu0 0
        %1004 = vmatprep.subr.bf16.mxu0 0
        %1005 = vmatpush2.bf16.msra.mxu0 0
        %1006 = vmatprep.subr.bf16.mxu0 0
        %1007 = vmatpush2.bf16.msra.mxu0 0
        %1008 = vmatprep.subr.bf16.mxu0 0
        %1009 = vmatpush2.bf16.msra.mxu0 0
        %1010 = vmatprep.subr.bf16.mxu0 0
        %1011 = vmatpush2.bf16.msra.mxu0 0
        %1012 = vmatprep.mubr.bf16.mxu0 0
        %1013 = vmatmul.mubr.bf16.gmra.mxu0 %v975
        %v1014 = vpop.f32.mrf.mxu0
        %v1015 = vadd.f32 0.0, %v1014
        %v1016 = vpop.f32.mrf.mxu0
        %v1017 = vpop.f32.mrf.mxu0
        %v1018 = vpop.f32.mrf.mxu0
        %1019 = vdwg.mxu0
        %v1020 = vadd.f32 %v856, %v1015
        %1021 = vrot.lane.b32.xlu0 %v541, 104
        %v1022 = vpop.permute.xlu0 %1021
        %1023 = vrot.lane.b32.xlu0 %v541, 72
        %v1024 = vpop.permute.xlu0 %1023
        %v1026 = vsel %vm545, %v1022, 0
        %v1029 = vsel %vm545, %v1024, 0
        %1031 = vmatprep.subr.bf16.mxu0 0
        %1032 = vmatpush1.bf16.xpose.msra.mxu0 0
        %1033 = vmatprep.subr.bf16.mxu0 0
        %1034 = vmatpush1.bf16.xpose.msra.mxu0 0
        %1035 = vmatprep.subr.bf16.mxu0 0
        %1036 = vmatpush1.bf16.xpose.msra.mxu0 0
        %1037 = vmatprep.subr.bf16.mxu0 0
        %1038 = vmatpush1.bf16.xpose.msra.mxu0 0
        %1039 = vmatprep.subr.bf16.mxu0 0
        %1040 = vmatpush1.bf16.xpose.msra.mxu0 0
        %1041 = vmatprep.subr.bf16.mxu0 0
        %1042 = vmatpush1.bf16.xpose.msra.mxu0 0
        %1043 = vmatprep.subr.bf16.mxu0 0
        %1044 = vmatpush1.bf16.xpose.msra.mxu0 0
        %1045 = vmatprep.subr.bf16.mxu0 0
        %1046 = vmatpush1.bf16.xpose.msra.mxu0 %v1029
        %1047 = vmatprep.subr.bf16.mxu0 0
        %1048 = vmatpush2.bf16.xpose.msra.mxu0 0
        %1049 = vmatprep.subr.bf16.mxu0 0
        %1050 = vmatpush2.bf16.xpose.msra.mxu0 0
        %1051 = vmatprep.subr.bf16.mxu0 0
        %1052 = vmatpush2.bf16.xpose.msra.mxu0 0
        %1053 = vmatprep.subr.bf16.mxu0 0
        %1054 = vmatpush2.bf16.xpose.msra.mxu0 0
        %1055 = vmatprep.subr.bf16.mxu0 0
        %1056 = vmatpush2.bf16.xpose.msra.mxu0 0
        %1057 = vmatprep.subr.bf16.mxu0 0
        %1058 = vmatpush2.bf16.xpose.msra.mxu0 0
        %1059 = vmatprep.subr.bf16.mxu0 0
        %1060 = vmatpush2.bf16.xpose.msra.mxu0 0
        %1061 = vmatprep.subr.bf16.mxu0 0
        %1062 = vmatpush2.bf16.xpose.msra.mxu0 0
        %1063 = vmatprep.mubr.bf16.mxu0 0
        %1064 = vmatmul.mubr.bf16.gmra.mxu0 %v1026
        %v1065 = vpop.f32.mrf.mxu0
        %v1066 = vadd.f32 0.0, %v1065
        %v1067 = vpop.f32.mrf.mxu0
        %v1068 = vpop.f32.mrf.mxu0
        %v1069 = vpop.f32.mrf.mxu0
        %1070 = vdwg.mxu0
        %v1071 = vsel %vm540, %v1066, -inf
        %v1072 = vsel %vm545, %v1071, -inf
        %1073 = vmax.xlane.f32.xlu0 %v1072
        %v1074 = vpop.xlane.xlu0 %1073
        %v1075 = vsub.f32 %v1071, %v1074
        %v1076 = vmul.f32 %v1075, 1.442695
        %v1077 = vpow.pop %v1076
        %v1078 = vsel %vm545, %v1077, 0.0
        %1079 = vadd.xlane.f32.xlu0 %v1078
        %v1080 = vpop.xlane.xlu0 %1079
        %v1081 = vrcp.pop %v1080
        %v1082 = vmul.f32 %v1077, %v1081
        %v1083 = vpack.c.bf16 %v1082, %v1082
        %1084 = vrot.lane.b32.xlu0 %v541, 40
        %v1085 = vpop.permute.xlu0 %1084
        %v1087 = vsel %vm545, %v1083, 0
        %v1090 = vsel %vm610, %v1085, 0
        %1092 = vmatprep.subr.bf16.mxu0 0
        %1093 = vmatpush1.bf16.msra.mxu0 0
        %1094 = vmatprep.subr.bf16.mxu0 0
        %1095 = vmatpush1.bf16.msra.mxu0 0
        %1096 = vmatprep.subr.bf16.mxu0 0
        %1097 = vmatpush1.bf16.msra.mxu0 0
        %1098 = vmatprep.subr.bf16.mxu0 0
        %1099 = vmatpush1.bf16.msra.mxu0 0
        %1100 = vmatprep.subr.bf16.mxu0 0
        %1101 = vmatpush1.bf16.msra.mxu0 0
        %1102 = vmatprep.subr.bf16.mxu0 0
        %1103 = vmatpush1.bf16.msra.mxu0 0
        %1104 = vmatprep.subr.bf16.mxu0 0
        %1105 = vmatpush1.bf16.msra.mxu0 0
        %1106 = vmatprep.subr.bf16.mxu0 0
        %1107 = vmatpush1.bf16.msra.mxu0 %v1090
        %1108 = vmatprep.subr.bf16.mxu0 0
        %1109 = vmatpush2.bf16.msra.mxu0 0
        %1110 = vmatprep.subr.bf16.mxu0 0
        %1111 = vmatpush2.bf16.msra.mxu0 0
        %1112 = vmatprep.subr.bf16.mxu0 0
        %1113 = vmatpush2.bf16.msra.mxu0 0
        %1114 = vmatprep.subr.bf16.mxu0 0
        %1115 = vmatpush2.bf16.msra.mxu0 0
        %1116 = vmatprep.subr.bf16.mxu0 0
        %1117 = vmatpush2.bf16.msra.mxu0 0
        %1118 = vmatprep.subr.bf16.mxu0 0
        %1119 = vmatpush2.bf16.msra.mxu0 0
        %1120 = vmatprep.subr.bf16.mxu0 0
        %1121 = vmatpush2.bf16.msra.mxu0 0
        %1122 = vmatprep.subr.bf16.mxu0 0
        %1123 = vmatpush2.bf16.msra.mxu0 0
        %1124 = vmatprep.mubr.bf16.mxu0 0
        %1125 = vmatmul.mubr.bf16.gmra.mxu0 %v1087
        %v1126 = vpop.f32.mrf.mxu0
        %v1127 = vadd.f32 0.0, %v1126
        %v1128 = vpop.f32.mrf.mxu0
        %v1129 = vpop.f32.mrf.mxu0
        %v1130 = vpop.f32.mrf.mxu0
        %1131 = vdwg.mxu0
        %v1132 = vpack.c.bf16 %v1127, %v1127
        %v1133 = vld [vmem:[%s5 + $0xc] sm:$0xf]
        %v1135 = vsel %vm545, %v1132, 0
        %v1138 = vsel %vm610, %v1133, 0
        %1140 = vmatprep.subr.bf16.mxu0 0
        %1141 = vmatpush1.bf16.msra.mxu0 0
        %1142 = vmatprep.subr.bf16.mxu0 0
        %1143 = vmatpush1.bf16.msra.mxu0 0
        %1144 = vmatprep.subr.bf16.mxu0 0
        %1145 = vmatpush1.bf16.msra.mxu0 0
        %1146 = vmatprep.subr.bf16.mxu0 0
        %1147 = vmatpush1.bf16.msra.mxu0 0
        %1148 = vmatprep.subr.bf16.mxu0 0
        %1149 = vmatpush1.bf16.msra.mxu0 0
        %1150 = vmatprep.subr.bf16.mxu0 0
        %1151 = vmatpush1.bf16.msra.mxu0 0
        %1152 = vmatprep.subr.bf16.mxu0 0
        %1153 = vmatpush1.bf16.msra.mxu0 0
        %1154 = vmatprep.subr.bf16.mxu0 0
        %1155 = vmatpush1.bf16.msra.mxu0 %v1138
        %1156 = vmatprep.subr.bf16.mxu0 0
        %1157 = vmatpush2.bf16.msra.mxu0 0
        %1158 = vmatprep.subr.bf16.mxu0 0
        %1159 = vmatpush2.bf16.msra.mxu0 0
        %1160 = vmatprep.subr.bf16.mxu0 0
        %1161 = vmatpush2.bf16.msra.mxu0 0
        %1162 = vmatprep.subr.bf16.mxu0 0
        %1163 = vmatpush2.bf16.msra.mxu0 0
        %1164 = vmatprep.subr.bf16.mxu0 0
        %1165 = vmatpush2.bf16.msra.mxu0 0
        %1166 = vmatprep.subr.bf16.mxu0 0
        %1167 = vmatpush2.bf16.msra.mxu0 0
        %1168 = vmatprep.subr.bf16.mxu0 0
        %1169 = vmatpush2.bf16.msra.mxu0 0
        %1170 = vmatprep.subr.bf16.mxu0 0
        %1171 = vmatpush2.bf16.msra.mxu0 0
        %1172 = vmatprep.mubr.bf16.mxu0 0
        %1173 = vmatmul.mubr.bf16.gmra.mxu0 %v1135
        %v1174 = vpop.f32.mrf.mxu0
        %v1175 = vadd.f32 0.0, %v1174
        %v1176 = vpop.f32.mrf.mxu0
        %v1177 = vpop.f32.mrf.mxu0
        %v1178 = vpop.f32.mrf.mxu0
        %1179 = vdwg.mxu0
        %v1180 = vadd.f32 %v1020, %v1175
        %v1181 = vadd.f32 %v437, %v1180
        %v1182 = vld [vmem:[%s6] sm:$0x1]
        %v1184 = vlaneseq
        %v1185 = vshrl.u32 %v1184, 7
        %v1186 = vsub.s32 0, %v1185
        %v1187 = vrot.slane %v1182, %v1186
        %v1189 = vadd.f32 %v1181, %v1187
        %v1190 = vld [vmem:[%s7] sm:$0x1]
        %v1191 = vld [vmem:[%s8] sm:$0x1]
        %v1192 = vsel %vm440, %v1189, 0.0
        %1193 = vadd.xlane.f32.xlu0 %v1192
        %v1194 = vpop.xlane.xlu0 %1193
        %v1195 = vmul.f32 %v1194, %v444
        %v1196 = vsub.f32 %v1189, %v1195
        %v1197 = vmul.f32 %v1196, %v1196
        %v1198 = vsel %vm440, %v1197, 0.0
        %1199 = vadd.xlane.f32.xlu0 %v1198
        %v1200 = vpop.xlane.xlu0 %1199
        %v1201 = vmul.f32 %v1200, %v444
        %v1202 = vadd.f32 %v1201, 1e-05
        %v1203 = vrsqrt.pop %v1202
        %v1204 = vmul.f32 %v1196, %v1203
        %v1206 = vlaneseq
        %v1207 = vshrl.u32 %v1206, 7
        %v1208 = vsub.s32 0, %v1207
        %v1209 = vrot.slane %v1190, %v1208
        %v1211 = vmul.f32 %v1204, %v1209
        %v1213 = vlaneseq
        %v1214 = vshrl.u32 %v1213, 7
        %v1215 = vsub.s32 0, %v1214
        %v1216 = vrot.slane %v1191, %v1215
        %v1218 = vadd.f32 %v1211, %v1216
        %v1219 = vpack.c.bf16 %v1218, %v1218
        %v1220 = vld [vmem:[%s9] sm:$0xf]
        %v1221 = vld [vmem:[%s9 + $0x4] sm:$0xf]
        %v1222 = vld [vmem:[%s9 + $0x8] sm:$0xf]
        %v1223 = vld [vmem:[%s9 + $0xc] sm:$0xf]
        %v1224 = vld [vmem:[%s10] sm:$0x1]
        %v1226 = vlaneseq
        %v1227 = vshrl.u32 %v1226, 7
        %v1228 = vsub.s32 0, %v1227
        %v1229 = vrot.slane %v1224, %v1228
        %v1235 = vunpack.c.l.b16 %v1220
        %v1236 = vunpack.c.l.b16 %v1221
        %v1237 = vunpack.c.l.b16 %v1222
        %v1238 = vunpack.c.l.b16 %v1223
        %v1239 = vpack.c.b16 %v1236, %v1235
        %v1240 = vpack.c.b16 %v1238, %v1237
        %v1244 = vsel %vm440, %v1219, 0
        %1246 = vmatprep.subr.bf16.mxu0 0
        %1247 = vmatpush1.bf16.msra.mxu0 0
        %1248 = vmatprep.subr.bf16.mxu0 0
        %1249 = vmatpush1.bf16.msra.mxu0 0
        %1250 = vmatprep.subr.bf16.mxu0 0
        %1251 = vmatpush1.bf16.msra.mxu0 0
        %1252 = vmatprep.subr.bf16.mxu0 0
        %1253 = vmatpush1.bf16.msra.mxu0 0
        %1254 = vmatprep.subr.bf16.mxu0 0
        %1255 = vmatpush1.bf16.msra.mxu0 0
        %1256 = vmatprep.subr.bf16.mxu0 0
        %1257 = vmatpush1.bf16.msra.mxu0 0
        %1258 = vmatprep.subr.bf16.mxu0 0
        %1259 = vmatpush1.bf16.msra.mxu0 %v1240
        %1260 = vmatprep.subr.bf16.mxu0 0
        %1261 = vmatpush1.bf16.msra.mxu0 %v1239
        %1262 = vmatprep.subr.bf16.mxu0 0
        %1263 = vmatpush2.bf16.msra.mxu0 0
        %1264 = vmatprep.subr.bf16.mxu0 0
        %1265 = vmatpush2.bf16.msra.mxu0 0
        %1266 = vmatprep.subr.bf16.mxu0 0
        %1267 = vmatpush2.bf16.msra.mxu0 0
        %1268 = vmatprep.subr.bf16.mxu0 0
        %1269 = vmatpush2.bf16.msra.mxu0 0
        %1270 = vmatprep.subr.bf16.mxu0 0
        %1271 = vmatpush2.bf16.msra.mxu0 0
        %1272 = vmatprep.subr.bf16.mxu0 0
        %1273 = vmatpush2.bf16.msra.mxu0 0
        %1274 = vmatprep.subr.bf16.mxu0 0
        %1275 = vmatpush2.bf16.msra.mxu0 0
        %1276 = vmatprep.subr.bf16.mxu0 0
        %1277 = vmatpush2.bf16.msra.mxu0 0
        %1278 = vmatprep.mubr.bf16.mxu0 0
        %1279 = vmatmul.mubr.bf16.gmra.mxu0 %v1244
        %v1280 = vpop.f32.mrf.mxu0
        %v1281 = vadd.f32 %v1229, %v1280
        %v1282 = vpop.f32.mrf.mxu0
        %v1283 = vpop.f32.mrf.mxu0
        %v1284 = vpop.f32.mrf.mxu0
        %1285 = vdwg.mxu0
        %v1286 = vmax.f32 %v1281, 0.0
        %v1287 = vpack.c.bf16 %v1286, %v1286
        %v1288 = vld [vmem:[%s11] sm:$0xf]
        %v1289 = vld [vmem:[%s11 + $0x4] sm:$0xf]
        %v1290 = vld [vmem:[%s11 + $0x8] sm:$0xf]
        %v1291 = vld [vmem:[%s11 + $0xc] sm:$0xf]
        %v1292 = vld [vmem:[%s11 + $0x10] sm:$0xf]
        %v1293 = vld [vmem:[%s11 + $0x14] sm:$0xf]
        %v1294 = vld [vmem:[%s11 + $0x18] sm:$0xf]
        %v1295 = vld [vmem:[%s11 + $0x1c] sm:$0xf]
        %v1296 = vld [vmem:[%s11 + $0x20] sm:$0xf]
        %v1297 = vld [vmem:[%s11 + $0x24] sm:$0xf]
        %v1298 = vld [vmem:[%s11 + $0x28] sm:$0xf]
        %v1299 = vld [vmem:[%s11 + $0x2c] sm:$0xf]
        %v1300 = vld [vmem:[%s11 + $0x30] sm:$0xf]
        %v1301 = vld [vmem:[%s11 + $0x34] sm:$0xf]
        %v1302 = vld [vmem:[%s11 + $0x38] sm:$0xf]
        %v1303 = vld [vmem:[%s11 + $0x3c] sm:$0xf]
        %v1304 = vld [vmem:[%s12] sm:$0x1]
        %v1306 = vlaneseq
        %v1307 = vshrl.u32 %v1306, 7
        %v1308 = vsub.s32 0, %v1307
        %v1309 = vrot.slane %v1304, %v1308
        %v1327 = vunpack.c.l.b16 %v1288
        %v1328 = vunpack.c.l.b16 %v1289
        %v1329 = vunpack.c.l.b16 %v1290
        %v1330 = vunpack.c.l.b16 %v1291
        %v1331 = vunpack.c.l.b16 %v1292
        %v1332 = vunpack.c.l.b16 %v1293
        %v1333 = vunpack.c.l.b16 %v1294
        %v1334 = vunpack.c.l.b16 %v1295
        %v1335 = vunpack.c.l.b16 %v1296
        %v1336 = vunpack.c.l.b16 %v1297
        %v1337 = vunpack.c.l.b16 %v1298
        %v1338 = vunpack.c.l.b16 %v1299
        %v1339 = vunpack.c.l.b16 %v1300
        %v1340 = vunpack.c.l.b16 %v1301
        %v1341 = vunpack.c.l.b16 %v1302
        %v1342 = vunpack.c.l.b16 %v1303
        %v1343 = vpack.c.b16 %v1328, %v1327
        %v1344 = vpack.c.b16 %v1330, %v1329
        %v1345 = vpack.c.b16 %v1332, %v1331
        %v1346 = vpack.c.b16 %v1334, %v1333
        %v1347 = vpack.c.b16 %v1336, %v1335
        %v1348 = vpack.c.b16 %v1338, %v1337
        %v1349 = vpack.c.b16 %v1340, %v1339
        %v1350 = vpack.c.b16 %v1342, %v1341
        %1359 = vmatprep.subr.bf16.mxu0 0
        %1360 = vmatpush1.bf16.msra.mxu0 %v1350
        %1361 = vmatprep.subr.bf16.mxu0 0
        %1362 = vmatpush1.bf16.msra.mxu0 %v1349
        %1363 = vmatprep.subr.bf16.mxu0 0
        %1364 = vmatpush1.bf16.msra.mxu0 %v1348
        %1365 = vmatprep.subr.bf16.mxu0 0
        %1366 = vmatpush1.bf16.msra.mxu0 %v1347
        %1367 = vmatprep.subr.bf16.mxu0 0
        %1368 = vmatpush1.bf16.msra.mxu0 %v1346
        %1369 = vmatprep.subr.bf16.mxu0 0
        %1370 = vmatpush1.bf16.msra.mxu0 %v1345
        %1371 = vmatprep.subr.bf16.mxu0 0
        %1372 = vmatpush1.bf16.msra.mxu0 %v1344
        %1373 = vmatprep.subr.bf16.mxu0 0
        %1374 = vmatpush1.bf16.msra.mxu0 %v1343
        %1375 = vmatprep.subr.bf16.mxu0 0
        %1376 = vmatpush2.bf16.msra.mxu0 0
        %1377 = vmatprep.subr.bf16.mxu0 0
        %1378 = vmatpush2.bf16.msra.mxu0 0
        %1379 = vmatprep.subr.bf16.mxu0 0
        %1380 = vmatpush2.bf16.msra.mxu0 0
        %1381 = vmatprep.subr.bf16.mxu0 0
        %1382 = vmatpush2.bf16.msra.mxu0 0
        %1383 = vmatprep.subr.bf16.mxu0 0
        %1384 = vmatpush2.bf16.msra.mxu0 0
        %1385 = vmatprep.subr.bf16.mxu0 0
        %1386 = vmatpush2.bf16.msra.mxu0 0
        %1387 = vmatprep.subr.bf16.mxu0 0
        %1388 = vmatpush2.bf16.msra.mxu0 0
        %1389 = vmatprep.subr.bf16.mxu0 0
        %1390 = vmatpush2.bf16.msra.mxu0 0
        %1391 = vmatprep.mubr.bf16.mxu0 0
        %1392 = vmatmul.mubr.bf16.gmra.mxu0 %v1287
        %v1393 = vpop.f32.mrf.mxu0
        %v1394 = vadd.f32 %v1309, %v1393
        %v1395 = vpop.f32.mrf.mxu0
        %v1396 = vpop.f32.mrf.mxu0
        %v1397 = vpop.f32.mrf.mxu0
        %1398 = vdwg.mxu0
        %v1399 = vadd.f32 %v1189, %v1394
        %1400 = vst.msk [vmem:[%s431] sm:$0xff] %vm440, %v1399
        %s1401 = sand.u32 %s313, 1
        %s1402 = scalar_lea.sflag [#allocation3], %s1401
        %s1403 = sand.u32 %s313, 1
        %s1404 = smul.addr %s1403, 8
        %s1405 = scalar_lea.vmem [#allocation2], %s1404
        // Predicated region
        $region73: #{tpu_custom_call.1} parent=71 // pred_check
          %p1406 = pneg %p323
        $region74: #{tpu_custom_call.1} parent=71 // pred_check_branch
          %1408 = sbr.rel (%p1406) target = $region76
        $region75: #{tpu_custom_call.1} parent=71 // pred_region
          %s1410 = ssub.s32 128, 128
          %1411 = vsyncadd %s1402, %s1410
          %s1412 = smul.addr %s27, 128
          %s1413 = scalar_lea.hbm %s13, %s1412
          %s1415 = sshll.u32 %s1405, 4
          %s1416 = int_to_ptr.vmem [resolvable:$true] %s1415
          %1418 = dma.vmem_to_hbm [thread:$0]  %s1416, 128, %s1413, %s1402
        $region76: #{tpu_custom_call.1} parent=71 // pred_fallthru
          _
      $region72: #{tpu_custom_call.1} parent=5 // pred_fallthru
        _
      %p1419 = scmp.le.s32.totalorder 2, %s22
      // Predicated region
      $region77: #{tpu_custom_call.1} parent=5 // pred_check
        %p1420 = pneg %p1419
      $region78: #{tpu_custom_call.1} parent=5 // pred_check_branch
        %1422 = sbr.rel (%p1420) target = $region80
      $region79: #{tpu_custom_call.1} parent=5 // pred_region
        %s1423 = ssub.s32 %s22, 2
        // Predicated region
        $region81: #{tpu_custom_call.1} parent=79 // pred_check
          %p1424 = pneg %p329
        $region82: #{tpu_custom_call.1} parent=79 // pred_check_branch
          %1426 = sbr.rel (%p1424) target = $region84
        $region83: #{tpu_custom_call.1} parent=79 // pred_region
          %s1427 = sand.u32 %s314, 1
          %s1428 = scalar_lea.sflag [#allocation3], %s1427
          %s1429 = sand.u32 %s314, 1
          %s1430 = smul.addr %s1429, 8
          %s1431 = scalar_lea.vmem [#allocation2], %s1430
          %1432 = dma.done %s1428, 128
        $region84: #{tpu_custom_call.1} parent=79 // pred_fallthru
          _
      $region80: #{tpu_custom_call.1} parent=5 // pred_fallthru
        _
    $region6: #{tpu_custom_call.1} parent=1 // loop_footer
      %s26 = sadd.s32 1, %s22
    $region7: #{tpu_custom_call.1} parent=1 // loop_footer_branch
      %21 = sbr.rel target = $region3
    $region8: #{tpu_custom_call.1} parent=1 // loop_exit
      _
    %1433 = vsyncpa [#allocation3], 1
    %s1434 = scalar_lea.sflag [#allocation3], 1
    %1435 = vsyncpa %s1434, 1

</llo_original>
